<compile_context>
chip_gen: v7x
topology: tpu7x:2x2x1
jax: 0.10.0
libtpu: 0.0.40
codegen_flags: <defaults>
</compile_context>

<pallas_src>
import jax
import jax.numpy as jnp
import numpy as np
from jax.experimental import pallas as pl
from jax.experimental.pallas import tpu as pltpu

_LANE = 128

# ---------------------------------------------------------------------------
# Bounded-range sine.
# One Cody-Waite reduction step into [-pi, pi] + odd degree-15 polynomial.
# Valid (well within f32 tolerance) for |x| up to ~1e4; SIREN pre-activations
# with the default init stay below ~50.
# ---------------------------------------------------------------------------
_INV_TWO_PI = 0.15915494309189535
_TWO_PI_HI = 6.28125                      # exactly representable in f32 (201/32)
_TWO_PI_LO = 1.9353071795864769e-03       # 2*pi - _TWO_PI_HI


def _fast_sin(x):
    n = jnp.floor(x * _INV_TWO_PI + 0.5)            # nearest multiple of 2*pi
    y = (x - n * _TWO_PI_HI) - n * _TWO_PI_LO        # y in [-pi, pi]
    y2 = y * y
    p = y2 * (-7.647163731819816e-13) + 1.6059043836821613e-10
    p = p * y2 - 2.505210838544172e-08
    p = p * y2 + 2.755731922398589e-06
    p = p * y2 - 1.984126984126984e-04
    p = p * y2 + 8.333333333333333e-03
    p = p * y2 - 1.6666666666666666e-01
    return y * (y2 * p + 1.0)


def _make_siren_kernel(num_sine_layers, use_fast_sin):
    """Kernel closure over the (static) layer structure."""
    sine = _fast_sin if use_fast_sin else jnp.sin

    def kernel(x_ref, *refs):
        # refs = (w0, b0, w1, b1, ..., wL, bL, out_ref); omega already folded
        # into the sine-layer weights/biases.
        out_ref = refs[-1]
        params = refs[:-1]
        h = x_ref[...]                               # (in_features, R), R on lanes
        for i in range(num_sine_layers):
            w = params[2 * i][...]                   # (out_i, in_i)
            b = params[2 * i + 1][...]               # (out_i, 1)
            # Even the K=2 first layer goes to the MXU: the vector-extended
            # slot has enormous slack while the VALU (sin polynomials) is the
            # saturating unit, so no VPU broadcast-FMA "shortcut" here.
            pre = jnp.dot(w, h, preferred_element_type=jnp.float32) + b
            h = sine(pre)
        w = params[-2][...]                          # (out_features, hidden)
        b = params[-1][...]                          # (out_features, 1)
        out_ref[...] = (jnp.dot(w, h, preferred_element_type=jnp.float32)
                        + b).astype(out_ref.dtype)

    return kernel


def fold_omega(weights, biases, omegas):
    """Fold omega_0 into the sine-layer weights/biases ONCE at setup time.

    weights[i]: (out_i, in_i)  (PyTorch nn.Linear layout)
    biases[i]:  (out_i, 1)
    """
    ws, bs = [], []
    for i, (w, b) in enumerate(zip(weights, biases)):
        if i < len(weights) - 1:
            ws.append(w * omegas[i])
            bs.append(b * omegas[i])
        else:
            ws.append(w)
            bs.append(b)
    return ws, bs


def _num_tensorcores():
    """TensorCores the 'parallel' grid axis can shard across on this chip."""
    try:
        kind = (jax.devices()[0].device_kind or "").lower()
    except Exception:
        return 1
    # v7x: 2 TCs per chip; v4/v5p megacore also presents 2 cores to the grid.
    if "v7" in kind or "v4" in kind or "v5p" in kind:
        return 2
    return 1


def _choose_block_cols(N, block_cols, num_tc):
    """Largest lane-multiple tile <= request; split only when >1 TC exists."""
    n_pad_min = pl.cdiv(N, _LANE) * _LANE
    bc = max(_LANE, (block_cols // _LANE) * _LANE)
    bc = min(bc, n_pad_min)
    if num_tc > 1:
        # Only force a multi-step grid when there is a second TensorCore to
        # feed; when the problem is big enough aim for >= 2 steps per core so
        # each core's own pipeline stays overlapped.
        min_steps = num_tc if n_pad_min < 2 * num_tc * _LANE else 2 * num_tc
        cap = max(_LANE, pl.cdiv(pl.cdiv(n_pad_min, min_steps), _LANE) * _LANE)
        bc = min(bc, cap)
    return bc


def siren_apply(coords_fm, folded_weights, folded_biases, *,
                block_cols=32768, use_fast_sin=True):
    """SIREN forward on feature-major coords.

    coords_fm: (in_features, N)  ->  (out_features, N).

    Feature-major in/out keeps N on lanes end-to-end (no wrapper transposes /
    extra HBM passes); the (out_features, N) result is channel-major, i.e.
    already the NCHW layout generate_image permutes to.
    folded_weights / folded_biases come from fold_omega().
    """
    in_features, N = coords_fm.shape
    out_features = folded_weights[-1].shape[0]
    num_sine_layers = len(folded_weights) - 1

    num_tc = _num_tensorcores()
    bc = _choose_block_cols(N, block_cols, num_tc)
    padded_N = pl.cdiv(N, bc) * bc
    grid = (padded_N // bc,)

    x = coords_fm
    if padded_N != N:
        x = jnp.pad(x, ((0, 0), (0, padded_N - N)))

    kernel = _make_siren_kernel(num_sine_layers, use_fast_sin)

    in_specs = [pl.BlockSpec((in_features, bc), lambda i: (0, i))]
    params_flat = []
    for w, b in zip(folded_weights, folded_biases):
        # Grid-invariant full-array blocks (tiny; Pallas skips the re-fetch
        # since the block index never changes).
        in_specs.append(pl.BlockSpec(w.shape, lambda i: (0, 0)))
        in_specs.append(pl.BlockSpec(b.shape, lambda i: (0, 0)))
        params_flat.extend([w, b])
    out_spec = pl.BlockSpec((out_features, bc), lambda i: (0, i))

    # Advisory cost estimate; sin is expanded to its real VALU op count so the
    # hint does not understate the kernel.
    flops = 0
    transcendentals = 0
    param_bytes = 0
    for li, w in enumerate(folded_weights):
        o, k = w.shape
        flops += 2 * padded_N * o * k + padded_N * o
        if li < num_sine_layers:
            if use_fast_sin:
                flops += padded_N * o * 24
            else:
                transcendentals += padded_N * o
        param_bytes += (w.size + folded_biases[li].size) * 4
    bytes_accessed = (x.size + out_features * padded_N) * 4 + param_bytes

    fn = pl.pallas_call(
        kernel,
        out_shape=jax.ShapeDtypeStruct((out_features, padded_N), coords_fm.dtype),
        grid_spec=pltpu.PrefetchScalarGridSpec(
            num_scalar_prefetch=0,
            grid=grid,
            in_specs=in_specs,
            out_specs=out_spec,
        ),
        compiler_params=pltpu.CompilerParams(
            dimension_semantics=("parallel",),
            # Explicit limit: large column tiles overshoot v5e's 16 MiB default
            # scoped VMEM; 64 MiB also fits v7x's per-TC physical VMEM.
            vmem_limit_bytes=64 * 1024 * 1024),
        cost_estimate=pl.CostEstimate(
            flops=int(flops),
            transcendentals=int(transcendentals),
            bytes_accessed=int(bytes_accessed)),
    )
    out_fm = fn(x, *params_flat)
    if padded_N != N:
        out_fm = out_fm[:, :N]
    return out_fm


def siren_forward(coords, folded_weights, folded_biases, **kwargs):
    """PyTorch-layout compat wrapper: (N, in_features) -> (N, out_features).

    Prefer siren_apply() with feature-major coords: each transpose here is an
    extra HBM round trip outside the pipelined kernel.
    """
    out_fm = siren_apply(coords.T, folded_weights, folded_biases, **kwargs)
    return out_fm.T


def init_siren_params(key, in_features, hidden_features, hidden_layers,
                      out_features, first_omega_0=30.0, hidden_omega_0=30.0):
    """Deterministic SIREN init matching the PyTorch module's scheme.

    Weight ranges follow SineLayer.init_weights / final_linear init; biases use
    torch nn.Linear's default bias init U(-1/sqrt(fan_in), 1/sqrt(fan_in)).
    Weights are returned in PyTorch layout (out, in); biases as (out, 1).
    """
    dims = [in_features] + [hidden_features] * (hidden_layers + 1) + [out_features]
    weights, biases, omegas = [], [], []
    n_layers = len(dims) - 1  # sine layers + final linear
    keys = jax.random.split(key, 2 * n_layers)
    for li in range(n_layers):
        fan_in, fan_out = dims[li], dims[li + 1]
        is_first = (li == 0)
        is_last = (li == n_layers - 1)
        if is_first:
            w_bound = 1.0 / fan_in
        else:
            w_bound = np.sqrt(6.0 / fan_in) / hidden_omega_0
        b_bound = 1.0 / np.sqrt(fan_in)
        w = jax.random.uniform(keys[2 * li], (fan_out, fan_in),
                               minval=-w_bound, maxval=w_bound,
                               dtype=jnp.float32)
        b = jax.random.uniform(keys[2 * li + 1], (fan_out, 1),
                               minval=-b_bound, maxval=b_bound,
                               dtype=jnp.float32)
        weights.append(w)
        biases.append(b)
        if not is_last:
            omegas.append(first_omega_0 if is_first else hidden_omega_0)
    return weights, biases, omegas


def siren_reference(coords, weights, biases, omegas):
    """Pure-JAX reference (un-folded omega, torch math) for correctness."""
    with jax.default_matmul_precision("float32"):
        h = coords
        for i in range(len(weights) - 1):
            h = jnp.sin(omegas[i] * (h @ weights[i].T + biases[i][:, 0]))
        return h @ weights[-1].T + biases[-1][:, 0]


if __name__ == "__main__":
    # Small SIREN: in=2 (xy coords), hidden=32, 2 hidden layers, out=3 (rgb).
    in_features, hidden_features, hidden_layers, out_features = 2, 32, 2, 3
    first_omega_0, hidden_omega_0 = 30.0, 30.0

    key = jax.random.PRNGKey(0)
    pkey, xkey = jax.random.split(key)
    weights, biases, omegas = init_siren_params(
        pkey, in_features, hidden_features, hidden_layers, out_features,
        first_omega_0, hidden_omega_0)
    fweights, fbiases = fold_omega(weights, biases, omegas)

    # Coordinates in [-1, 1], generated FEATURE-MAJOR (2, N) at the source
    # (a meshgrid is trivially producible transposed), so there is no
    # wrapper-side transpose around the kernel.  N deliberately NOT a lane
    # multiple to exercise the padded tail.
    N = 300
    coords_fm = jax.random.uniform(xkey, (in_features, N),
                                   minval=-1.0, maxval=1.0, dtype=jnp.float32)

    out_fast = jax.block_until_ready(
        siren_apply(coords_fm, fweights, fbiases, use_fast_sin=True))
    out_exact = jax.block_until_ready(
        siren_apply(coords_fm, fweights, fbiases, use_fast_sin=False))
    out_compat = jax.block_until_ready(
        siren_forward(coords_fm.T, fweights, fbiases))   # (N, out) compat path

    ref = siren_reference(coords_fm.T, weights, biases, omegas)

    # Exact-sin kernel must match the torch-math reference tightly.
    np.testing.assert_allclose(np.asarray(out_exact.T), np.asarray(ref),
                               rtol=5e-5, atol=5e-5)
    # Bounded-range sine adds ~1e-6 abs error per activation; still tight.
    np.testing.assert_allclose(np.asarray(out_fast.T), np.asarray(ref),
                               rtol=1e-4, atol=1e-4)
    # Compat wrapper is the same kernel modulo layout.
    np.testing.assert_allclose(np.asarray(out_compat), np.asarray(out_fast.T),
                               rtol=1e-6, atol=1e-6)

    # TODO(synk): generate_image's tanh + reshape is host-side glue, left in
    # plain JAX (not part of Siren.forward); note the kernel's (out, N) output
    # is already channel-major, so the NHWC->NCHW permute disappears.
    print("KERNEL_OK")
</pallas_src>

<mosaic_0001>
module attributes {stable_mosaic.version = 11 : i64} {
  func.func @kernel(%arg0: i32, %arg1: memref<2x384xf32, #tpu.memory_space<vmem>>, %arg2: memref<32x2xf32, #tpu.memory_space<vmem>>, %arg3: memref<32x1xf32, #tpu.memory_space<vmem>>, %arg4: memref<32x32xf32, #tpu.memory_space<vmem>>, %arg5: memref<32x1xf32, #tpu.memory_space<vmem>>, %arg6: memref<32x32xf32, #tpu.memory_space<vmem>>, %arg7: memref<32x1xf32, #tpu.memory_space<vmem>>, %arg8: memref<3x32xf32, #tpu.memory_space<vmem>>, %arg9: memref<3x1xf32, #tpu.memory_space<vmem>>, %arg10: memref<3x384xf32, #tpu.memory_space<vmem>>) attributes {dimension_semantics = [#tpu.dimension_semantics<parallel>], iteration_bounds = array<i64: 1>, scalar_prefetch = 0 : i64, scratch_operands = 0 : i64, tpu.core_type = #tpu.core_type<tc>, window_params = [{transform_indices = @transform_0, window_bounds = array<i64: 2, 384>}, {pipeline_mode = #tpu.pipeline_mode<synchronous>, transform_indices = @transform_1, window_bounds = array<i64: 32, 2>}, {pipeline_mode = #tpu.pipeline_mode<synchronous>, transform_indices = @transform_2, window_bounds = array<i64: 32, 1>}, {pipeline_mode = #tpu.pipeline_mode<synchronous>, transform_indices = @transform_3, window_bounds = array<i64: 32, 32>}, {pipeline_mode = #tpu.pipeline_mode<synchronous>, transform_indices = @transform_4, window_bounds = array<i64: 32, 1>}, {pipeline_mode = #tpu.pipeline_mode<synchronous>, transform_indices = @transform_5, window_bounds = array<i64: 32, 32>}, {pipeline_mode = #tpu.pipeline_mode<synchronous>, transform_indices = @transform_6, window_bounds = array<i64: 32, 1>}, {pipeline_mode = #tpu.pipeline_mode<synchronous>, transform_indices = @transform_7, window_bounds = array<i64: 3, 32>}, {pipeline_mode = #tpu.pipeline_mode<synchronous>, transform_indices = @transform_8, window_bounds = array<i64: 3, 1>}, {transform_indices = @transform_9, window_bounds = array<i64: 3, 384>}]} {
    %c0 = arith.constant 0 : index
    %c0_0 = arith.constant 0 : index
    %0 = vector.load %arg1[%c0, %c0_0] : memref<2x384xf32, #tpu.memory_space<vmem>>, vector<2x384xf32>
    %c0_1 = arith.constant 0 : index
    %c0_2 = arith.constant 0 : index
    %1 = vector.load %arg2[%c0_1, %c0_2] : memref<32x2xf32, #tpu.memory_space<vmem>>, vector<32x2xf32>
    %c0_3 = arith.constant 0 : index
    %c0_4 = arith.constant 0 : index
    %2 = vector.load %arg3[%c0_3, %c0_4] : memref<32x1xf32, #tpu.memory_space<vmem>>, vector<32x1xf32>
    %cst = arith.constant dense<0.000000e+00> : vector<32x384xf32>
    %3 = tpu.matmul %1, %0, %cst {dimension_numbers = #tpu.dot_dimension_numbers<[1], [0], [0], [1], [0, 0, 1, 1], [], []>} : vector<32x2xf32>, vector<2x384xf32>, vector<32x384xf32> -> vector<32x384xf32>
    %4 = vector.broadcast %2 : vector<32x1xf32> to vector<32x384xf32>
    %5 = arith.addf %3, %4 : vector<32x384xf32>
    %cst_5 = arith.constant 0.159154937 : f32
    %6 = vector.broadcast %cst_5 : f32 to vector<32x384xf32>
    %7 = arith.mulf %5, %6 : vector<32x384xf32>
    %cst_6 = arith.constant 5.000000e-01 : f32
    %8 = vector.broadcast %cst_6 : f32 to vector<32x384xf32>
    %9 = arith.addf %7, %8 : vector<32x384xf32>
    %10 = math.floor %9 : vector<32x384xf32>
    %cst_7 = arith.constant 6.281250e+00 : f32
    %11 = vector.broadcast %cst_7 : f32 to vector<32x384xf32>
    %12 = arith.mulf %10, %11 : vector<32x384xf32>
    %13 = arith.subf %5, %12 : vector<32x384xf32>
    %cst_8 = arith.constant 0.00193530717 : f32
    %14 = vector.broadcast %cst_8 : f32 to vector<32x384xf32>
    %15 = arith.mulf %10, %14 : vector<32x384xf32>
    %16 = arith.subf %13, %15 : vector<32x384xf32>
    %17 = arith.mulf %16, %16 : vector<32x384xf32>
    %cst_9 = arith.constant -7.6471636E-13 : f32
    %18 = vector.broadcast %cst_9 : f32 to vector<32x384xf32>
    %19 = arith.mulf %17, %18 : vector<32x384xf32>
    %cst_10 = arith.constant 1.60590444E-10 : f32
    %20 = vector.broadcast %cst_10 : f32 to vector<32x384xf32>
    %21 = arith.addf %19, %20 : vector<32x384xf32>
    %22 = arith.mulf %21, %17 : vector<32x384xf32>
    %cst_11 = arith.constant 2.50521079E-8 : f32
    %23 = vector.broadcast %cst_11 : f32 to vector<32x384xf32>
    %24 = arith.subf %22, %23 : vector<32x384xf32>
    %25 = arith.mulf %24, %17 : vector<32x384xf32>
    %cst_12 = arith.constant 2.75573188E-6 : f32
    %26 = vector.broadcast %cst_12 : f32 to vector<32x384xf32>
    %27 = arith.addf %25, %26 : vector<32x384xf32>
    %28 = arith.mulf %27, %17 : vector<32x384xf32>
    %cst_13 = arith.constant 1.98412701E-4 : f32
    %29 = vector.broadcast %cst_13 : f32 to vector<32x384xf32>
    %30 = arith.subf %28, %29 : vector<32x384xf32>
    %31 = arith.mulf %30, %17 : vector<32x384xf32>
    %cst_14 = arith.constant 0.00833333377 : f32
    %32 = vector.broadcast %cst_14 : f32 to vector<32x384xf32>
    %33 = arith.addf %31, %32 : vector<32x384xf32>
    %34 = arith.mulf %33, %17 : vector<32x384xf32>
    %cst_15 = arith.constant 0.166666672 : f32
    %35 = vector.broadcast %cst_15 : f32 to vector<32x384xf32>
    %36 = arith.subf %34, %35 : vector<32x384xf32>
    %37 = arith.mulf %17, %36 : vector<32x384xf32>
    %cst_16 = arith.constant 1.000000e+00 : f32
    %38 = vector.broadcast %cst_16 : f32 to vector<32x384xf32>
    %39 = arith.addf %37, %38 : vector<32x384xf32>
    %40 = arith.mulf %16, %39 : vector<32x384xf32>
    %c0_17 = arith.constant 0 : index
    %c0_18 = arith.constant 0 : index
    %41 = vector.load %arg4[%c0_17, %c0_18] : memref<32x32xf32, #tpu.memory_space<vmem>>, vector<32x32xf32>
    %c0_19 = arith.constant 0 : index
    %c0_20 = arith.constant 0 : index
    %42 = vector.load %arg5[%c0_19, %c0_20] : memref<32x1xf32, #tpu.memory_space<vmem>>, vector<32x1xf32>
    %cst_21 = arith.constant dense<0.000000e+00> : vector<32x384xf32>
    %43 = tpu.matmul %41, %40, %cst_21 {dimension_numbers = #tpu.dot_dimension_numbers<[1], [0], [0], [1], [0, 0, 1, 1], [], []>} : vector<32x32xf32>, vector<32x384xf32>, vector<32x384xf32> -> vector<32x384xf32>
    %44 = vector.broadcast %42 : vector<32x1xf32> to vector<32x384xf32>
    %45 = arith.addf %43, %44 : vector<32x384xf32>
    %cst_22 = arith.constant 0.159154937 : f32
    %46 = vector.broadcast %cst_22 : f32 to vector<32x384xf32>
    %47 = arith.mulf %45, %46 : vector<32x384xf32>
    %cst_23 = arith.constant 5.000000e-01 : f32
    %48 = vector.broadcast %cst_23 : f32 to vector<32x384xf32>
    %49 = arith.addf %47, %48 : vector<32x384xf32>
    %50 = math.floor %49 : vector<32x384xf32>
    %cst_24 = arith.constant 6.281250e+00 : f32
    %51 = vector.broadcast %cst_24 : f32 to vector<32x384xf32>
    %52 = arith.mulf %50, %51 : vector<32x384xf32>
    %53 = arith.subf %45, %52 : vector<32x384xf32>
    %cst_25 = arith.constant 0.00193530717 : f32
    %54 = vector.broadcast %cst_25 : f32 to vector<32x384xf32>
    %55 = arith.mulf %50, %54 : vector<32x384xf32>
    %56 = arith.subf %53, %55 : vector<32x384xf32>
    %57 = arith.mulf %56, %56 : vector<32x384xf32>
    %cst_26 = arith.constant -7.6471636E-13 : f32
    %58 = vector.broadcast %cst_26 : f32 to vector<32x384xf32>
    %59 = arith.mulf %57, %58 : vector<32x384xf32>
    %cst_27 = arith.constant 1.60590444E-10 : f32
    %60 = vector.broadcast %cst_27 : f32 to vector<32x384xf32>
    %61 = arith.addf %59, %60 : vector<32x384xf32>
    %62 = arith.mulf %61, %57 : vector<32x384xf32>
    %cst_28 = arith.constant 2.50521079E-8 : f32
    %63 = vector.broadcast %cst_28 : f32 to vector<32x384xf32>
    %64 = arith.subf %62, %63 : vector<32x384xf32>
    %65 = arith.mulf %64, %57 : vector<32x384xf32>
    %cst_29 = arith.constant 2.75573188E-6 : f32
    %66 = vector.broadcast %cst_29 : f32 to vector<32x384xf32>
    %67 = arith.addf %65, %66 : vector<32x384xf32>
    %68 = arith.mulf %67, %57 : vector<32x384xf32>
    %cst_30 = arith.constant 1.98412701E-4 : f32
    %69 = vector.broadcast %cst_30 : f32 to vector<32x384xf32>
    %70 = arith.subf %68, %69 : vector<32x384xf32>
    %71 = arith.mulf %70, %57 : vector<32x384xf32>
    %cst_31 = arith.constant 0.00833333377 : f32
    %72 = vector.broadcast %cst_31 : f32 to vector<32x384xf32>
    %73 = arith.addf %71, %72 : vector<32x384xf32>
    %74 = arith.mulf %73, %57 : vector<32x384xf32>
    %cst_32 = arith.constant 0.166666672 : f32
    %75 = vector.broadcast %cst_32 : f32 to vector<32x384xf32>
    %76 = arith.subf %74, %75 : vector<32x384xf32>
    %77 = arith.mulf %57, %76 : vector<32x384xf32>
    %cst_33 = arith.constant 1.000000e+00 : f32
    %78 = vector.broadcast %cst_33 : f32 to vector<32x384xf32>
    %79 = arith.addf %77, %78 : vector<32x384xf32>
    %80 = arith.mulf %56, %79 : vector<32x384xf32>
    %c0_34 = arith.constant 0 : index
    %c0_35 = arith.constant 0 : index
    %81 = vector.load %arg6[%c0_34, %c0_35] : memref<32x32xf32, #tpu.memory_space<vmem>>, vector<32x32xf32>
    %c0_36 = arith.constant 0 : index
    %c0_37 = arith.constant 0 : index
    %82 = vector.load %arg7[%c0_36, %c0_37] : memref<32x1xf32, #tpu.memory_space<vmem>>, vector<32x1xf32>
    %cst_38 = arith.constant dense<0.000000e+00> : vector<32x384xf32>
    %83 = tpu.matmul %81, %80, %cst_38 {dimension_numbers = #tpu.dot_dimension_numbers<[1], [0], [0], [1], [0, 0, 1, 1], [], []>} : vector<32x32xf32>, vector<32x384xf32>, vector<32x384xf32> -> vector<32x384xf32>
    %84 = vector.broadcast %82 : vector<32x1xf32> to vector<32x384xf32>
    %85 = arith.addf %83, %84 : vector<32x384xf32>
    %cst_39 = arith.constant 0.159154937 : f32
    %86 = vector.broadcast %cst_39 : f32 to vector<32x384xf32>
    %87 = arith.mulf %85, %86 : vector<32x384xf32>
    %cst_40 = arith.constant 5.000000e-01 : f32
    %88 = vector.broadcast %cst_40 : f32 to vector<32x384xf32>
    %89 = arith.addf %87, %88 : vector<32x384xf32>
    %90 = math.floor %89 : vector<32x384xf32>
    %cst_41 = arith.constant 6.281250e+00 : f32
    %91 = vector.broadcast %cst_41 : f32 to vector<32x384xf32>
    %92 = arith.mulf %90, %91 : vector<32x384xf32>
    %93 = arith.subf %85, %92 : vector<32x384xf32>
    %cst_42 = arith.constant 0.00193530717 : f32
    %94 = vector.broadcast %cst_42 : f32 to vector<32x384xf32>
    %95 = arith.mulf %90, %94 : vector<32x384xf32>
    %96 = arith.subf %93, %95 : vector<32x384xf32>
    %97 = arith.mulf %96, %96 : vector<32x384xf32>
    %cst_43 = arith.constant -7.6471636E-13 : f32
    %98 = vector.broadcast %cst_43 : f32 to vector<32x384xf32>
    %99 = arith.mulf %97, %98 : vector<32x384xf32>
    %cst_44 = arith.constant 1.60590444E-10 : f32
    %100 = vector.broadcast %cst_44 : f32 to vector<32x384xf32>
    %101 = arith.addf %99, %100 : vector<32x384xf32>
    %102 = arith.mulf %101, %97 : vector<32x384xf32>
    %cst_45 = arith.constant 2.50521079E-8 : f32
    %103 = vector.broadcast %cst_45 : f32 to vector<32x384xf32>
    %104 = arith.subf %102, %103 : vector<32x384xf32>
    %105 = arith.mulf %104, %97 : vector<32x384xf32>
    %cst_46 = arith.constant 2.75573188E-6 : f32
    %106 = vector.broadcast %cst_46 : f32 to vector<32x384xf32>
    %107 = arith.addf %105, %106 : vector<32x384xf32>
    %108 = arith.mulf %107, %97 : vector<32x384xf32>
    %cst_47 = arith.constant 1.98412701E-4 : f32
    %109 = vector.broadcast %cst_47 : f32 to vector<32x384xf32>
    %110 = arith.subf %108, %109 : vector<32x384xf32>
    %111 = arith.mulf %110, %97 : vector<32x384xf32>
    %cst_48 = arith.constant 0.00833333377 : f32
    %112 = vector.broadcast %cst_48 : f32 to vector<32x384xf32>
    %113 = arith.addf %111, %112 : vector<32x384xf32>
    %114 = arith.mulf %113, %97 : vector<32x384xf32>
    %cst_49 = arith.constant 0.166666672 : f32
    %115 = vector.broadcast %cst_49 : f32 to vector<32x384xf32>
    %116 = arith.subf %114, %115 : vector<32x384xf32>
    %117 = arith.mulf %97, %116 : vector<32x384xf32>
    %cst_50 = arith.constant 1.000000e+00 : f32
    %118 = vector.broadcast %cst_50 : f32 to vector<32x384xf32>
    %119 = arith.addf %117, %118 : vector<32x384xf32>
    %120 = arith.mulf %96, %119 : vector<32x384xf32>
    %c0_51 = arith.constant 0 : index
    %c0_52 = arith.constant 0 : index
    %121 = vector.load %arg8[%c0_51, %c0_52] : memref<3x32xf32, #tpu.memory_space<vmem>>, vector<3x32xf32>
    %c0_53 = arith.constant 0 : index
    %c0_54 = arith.constant 0 : index
    %122 = vector.load %arg9[%c0_53, %c0_54] : memref<3x1xf32, #tpu.memory_space<vmem>>, vector<3x1xf32>
    %cst_55 = arith.constant dense<0.000000e+00> : vector<3x384xf32>
    %123 = tpu.matmul %121, %120, %cst_55 {dimension_numbers = #tpu.dot_dimension_numbers<[1], [0], [0], [1], [0, 0, 1, 1], [], []>} : vector<3x32xf32>, vector<32x384xf32>, vector<3x384xf32> -> vector<3x384xf32>
    %124 = vector.broadcast %122 : vector<3x1xf32> to vector<3x384xf32>
    %125 = arith.addf %123, %124 : vector<3x384xf32>
    %c0_56 = arith.constant 0 : index
    %c0_57 = arith.constant 0 : index
    %126 = vector.load %arg10[%c0_56, %c0_57] : memref<3x384xf32, #tpu.memory_space<vmem>>, vector<3x384xf32>
    tpu.vector_store %arg10[%c0_56, %c0_57], %125 {strides = array<i32>} : memref<3x384xf32, #tpu.memory_space<vmem>>, vector<3x384xf32>,
    return
  }
  func.func @transform_0(%arg0: i32) -> (i32, i32) {
    %c0_i32 = arith.constant 0 : i32
    %c0_i32_0 = arith.constant 0 : i32
    return %c0_i32, %arg0 : i32, i32
  }
  func.func @transform_1(%arg0: i32) -> (i32, i32) {
    %c0_i32 = arith.constant 0 : i32
    %c0_i32_0 = arith.constant 0 : i32
    %c0_i32_1 = arith.constant 0 : i32
    return %c0_i32, %c0_i32_0 : i32, i32
  }
  func.func @transform_2(%arg0: i32) -> (i32, i32) {
    %c0_i32 = arith.constant 0 : i32
    %c0_i32_0 = arith.constant 0 : i32
    %c0_i32_1 = arith.constant 0 : i32
    return %c0_i32, %c0_i32_0 : i32, i32
  }
  func.func @transform_3(%arg0: i32) -> (i32, i32) {
    %c0_i32 = arith.constant 0 : i32
    %c0_i32_0 = arith.constant 0 : i32
    %c0_i32_1 = arith.constant 0 : i32
    return %c0_i32, %c0_i32_0 : i32, i32
  }
  func.func @transform_4(%arg0: i32) -> (i32, i32) {
    %c0_i32 = arith.constant 0 : i32
    %c0_i32_0 = arith.constant 0 : i32
    %c0_i32_1 = arith.constant 0 : i32
    return %c0_i32, %c0_i32_0 : i32, i32
  }
  func.func @transform_5(%arg0: i32) -> (i32, i32) {
    %c0_i32 = arith.constant 0 : i32
    %c0_i32_0 = arith.constant 0 : i32
    %c0_i32_1 = arith.constant 0 : i32
    return %c0_i32, %c0_i32_0 : i32, i32
  }
  func.func @transform_6(%arg0: i32) -> (i32, i32) {
    %c0_i32 = arith.constant 0 : i32
    %c0_i32_0 = arith.constant 0 : i32
    %c0_i32_1 = arith.constant 0 : i32
    return %c0_i32, %c0_i32_0 : i32, i32
  }
  func.func @transform_7(%arg0: i32) -> (i32, i32) {
    %c0_i32 = arith.constant 0 : i32
    %c0_i32_0 = arith.constant 0 : i32
    %c0_i32_1 = arith.constant 0 : i32
    return %c0_i32, %c0_i32_0 : i32, i32
  }
  func.func @transform_8(%arg0: i32) -> (i32, i32) {
    %c0_i32 = arith.constant 0 : i32
    %c0_i32_0 = arith.constant 0 : i32
    %c0_i32_1 = arith.constant 0 : i32
    return %c0_i32, %c0_i32_0 : i32, i32
  }
  func.func @transform_9(%arg0: i32) -> (i32, i32) {
    %c0_i32 = arith.constant 0 : i32
    %c0_i32_0 = arith.constant 0 : i32
    return %c0_i32, %arg0 : i32, i32
  }
}

</mosaic_0001>

<llo_original>
// kernel: tpu_custom_call.1
$region0: #{tpu_custom_call.1}
  #allocation0 [shape = 'u32[]', space=smem, size = 0x4, offset = 0x4, fixed_abs, tag = 'smem constant byte address 0x4 - core index']
  #allocation1 [shape = 'u32[144,128]{1,0:T(1,128)}', space=vmem, size = 0x12000, scoped, tag = 'internal scratch']
  %s0 = inlined_call_operand.hbm [shape: f32[2,384], index: 0, kind: input, shape index: {}]
  %s1 = inlined_call_operand.hbm [shape: f32[32,2], index: 1, kind: input, shape index: {}]
  %s2 = inlined_call_operand.hbm [shape: f32[32,1], index: 2, kind: input, shape index: {}]
  %s3 = inlined_call_operand.hbm [shape: f32[32,32], index: 3, kind: input, shape index: {}]
  %s4 = inlined_call_operand.hbm [shape: f32[32,1], index: 4, kind: input, shape index: {}]
  %s5 = inlined_call_operand.hbm [shape: f32[32,32], index: 5, kind: input, shape index: {}]
  %s6 = inlined_call_operand.hbm [shape: f32[32,1], index: 6, kind: input, shape index: {}]
  %s7 = inlined_call_operand.hbm [shape: f32[3,32], index: 7, kind: input, shape index: {}]
  %s8 = inlined_call_operand.hbm [shape: f32[3,1], index: 8, kind: input, shape index: {}]
  %s9 = inlined_call_operand.hbm [shape: f32[3,384], index: 9, kind: output, shape index: {}]
  %s10 = sld [smem:[#allocation0]]
  $region82: #{tpu_custom_call.1} parent=0
    _
  %s12 = ssub.s32 1, %s10
  %s13 = scalar_select 0, %s12, %s10
  $region1: #{tpu_custom_call.1} parent=0
    #allocation2 [shape = 'u8[3072]{0}', space=vmem, size = 0xc00, scoped, tag = 'input window, operand 0, single buffered']
    #allocation3 [shape = 's32[1]{0}', space=sflag, size = 0x4, scoped, tag = 'scoped memory for tpu_custom_call.1']
    #allocation4 [shape = 's32[1]{0}', space=sflag, size = 0x4, scoped, tag = 'scoped memory for tpu_custom_call.1']
    #allocation5 [shape = 'u8[16384]{0}', space=vmem, size = 0x4000, scoped, tag = 'input window, operand 1, single buffered']
    #allocation6 [shape = 's32[1]{0}', space=sflag, size = 0x4, scoped, tag = 'scoped memory for tpu_custom_call.1']
    #allocation7 [shape = 'u8[16384]{0}', space=vmem, size = 0x4000, scoped, tag = 'input window, operand 2, single buffered']
    #allocation8 [shape = 'u8[16384]{0}', space=vmem, size = 0x4000, scoped, tag = 'input window, operand 3, single buffered']
    #allocation9 [shape = 's32[1]{0}', space=sflag, size = 0x4, scoped, tag = 'scoped memory for tpu_custom_call.1']
    #allocation10 [shape = 'u8[16384]{0}', space=vmem, size = 0x4000, scoped, tag = 'input window, operand 4, single buffered']
    #allocation11 [shape = 'u8[16384]{0}', space=vmem, size = 0x4000, scoped, tag = 'input window, operand 5, single buffered']
    #allocation12 [shape = 's32[1]{0}', space=sflag, size = 0x4, scoped, tag = 'scoped memory for tpu_custom_call.1']
    #allocation13 [shape = 'u8[16384]{0}', space=vmem, size = 0x4000, scoped, tag = 'input window, operand 6, single buffered']
    #allocation14 [shape = 'u8[2048]{0}', space=vmem, size = 0x800, scoped, tag = 'input window, operand 7, single buffered']
    #allocation15 [shape = 's32[1]{0}', space=sflag, size = 0x4, scoped, tag = 'scoped memory for tpu_custom_call.1']
    #allocation16 [shape = 'u8[2048]{0}', space=vmem, size = 0x800, scoped, tag = 'input window, operand 8, single buffered']
    #allocation17 [shape = 'u8[6144]{0}', space=vmem, size = 0x1800, scoped, tag = 'output window, operand 0, single buffered']
    %14 = vsyncpa [#allocation3], 0
    %15 = vsyncpa [#allocation6], 0
    %16 = vsyncpa [#allocation9], 0
    %17 = vsyncpa [#allocation12], 0
    %18 = vsyncpa [#allocation15], 0
    %19 = vsyncpa [#allocation4], 0
    // Predicated region
    $region2: #{tpu_custom_call.1} parent=1 // pred_check
      _
    $region3: #{tpu_custom_call.1} parent=1 // pred_check_branch
      %21 = sbr.rel (0) target = $region5
    $region4: #{tpu_custom_call.1} parent=1 // pred_region
      %s23 = ssub.s32 96, 96
      %24 = vsyncadd [#allocation3], %s23
      %s26 = sshll.u32 [#allocation2], 4
      %s27 = int_to_ptr.vmem [resolvable:$true] %s26
      %29 = dma.hbm_to_vmem [thread:$0]  %s0, 96, %s27, [#allocation3]
    $region5: #{tpu_custom_call.1} parent=1 // pred_fallthru
      _
    // Predicated region
    $region6: #{tpu_custom_call.1} parent=1 // pred_check
      _
    $region7: #{tpu_custom_call.1} parent=1 // pred_check_branch
      %31 = sbr.rel (0) target = $region9
    $region8: #{tpu_custom_call.1} parent=1 // pred_region
      %s33 = ssub.s32 512, 512
      %34 = vsyncadd [#allocation6], %s33
      %s35 = sshll.u32 [#allocation5], 4
      %s36 = int_to_ptr.vmem [resolvable:$true] %s35
      %41 = dma.hbm_to_vmem [thread:$0]  %s1, 512, %s36, [#allocation6], 128, 128, 8
    $region9: #{tpu_custom_call.1} parent=1 // pred_fallthru
      _
    // Predicated region
    $region10: #{tpu_custom_call.1} parent=1 // pred_check
      _
    $region11: #{tpu_custom_call.1} parent=1 // pred_check_branch
      %43 = sbr.rel (0) target = $region13
    $region12: #{tpu_custom_call.1} parent=1 // pred_region
      %s45 = ssub.s32 512, 512
      %46 = vsyncadd [#allocation6], %s45
      %s47 = sshll.u32 [#allocation7], 4
      %s48 = int_to_ptr.vmem [resolvable:$true] %s47
      %53 = dma.hbm_to_vmem [thread:$0]  %s2, 512, %s48, [#allocation6], 128, 128, 8
    $region13: #{tpu_custom_call.1} parent=1 // pred_fallthru
      _
    // Predicated region
    $region14: #{tpu_custom_call.1} parent=1 // pred_check
      _
    $region15: #{tpu_custom_call.1} parent=1 // pred_check_branch
      %55 = sbr.rel (0) target = $region17
    $region16: #{tpu_custom_call.1} parent=1 // pred_region
      %s57 = ssub.s32 512, 512
      %58 = vsyncadd [#allocation9], %s57
      %s59 = sshll.u32 [#allocation8], 4
      %s60 = int_to_ptr.vmem [resolvable:$true] %s59
      %65 = dma.hbm_to_vmem [thread:$0]  %s3, 512, %s60, [#allocation9], 128, 128, 8
    $region17: #{tpu_custom_call.1} parent=1 // pred_fallthru
      _
    // Predicated region
    $region18: #{tpu_custom_call.1} parent=1 // pred_check
      _
    $region19: #{tpu_custom_call.1} parent=1 // pred_check_branch
      %67 = sbr.rel (0) target = $region21
    $region20: #{tpu_custom_call.1} parent=1 // pred_region
      %s69 = ssub.s32 512, 512
      %70 = vsyncadd [#allocation9], %s69
      %s71 = sshll.u32 [#allocation10], 4
      %s72 = int_to_ptr.vmem [resolvable:$true] %s71
      %77 = dma.hbm_to_vmem [thread:$0]  %s4, 512, %s72, [#allocation9], 128, 128, 8
    $region21: #{tpu_custom_call.1} parent=1 // pred_fallthru
      _
    // Predicated region
    $region22: #{tpu_custom_call.1} parent=1 // pred_check
      _
    $region23: #{tpu_custom_call.1} parent=1 // pred_check_branch
      %79 = sbr.rel (0) target = $region25
    $region24: #{tpu_custom_call.1} parent=1 // pred_region
      %s81 = ssub.s32 512, 512
      %82 = vsyncadd [#allocation12], %s81
      %s83 = sshll.u32 [#allocation11], 4
      %s84 = int_to_ptr.vmem [resolvable:$true] %s83
      %89 = dma.hbm_to_vmem [thread:$0]  %s5, 512, %s84, [#allocation12], 128, 128, 8
    $region25: #{tpu_custom_call.1} parent=1 // pred_fallthru
      _
    // Predicated region
    $region26: #{tpu_custom_call.1} parent=1 // pred_check
      _
    $region27: #{tpu_custom_call.1} parent=1 // pred_check_branch
      %91 = sbr.rel (0) target = $region29
    $region28: #{tpu_custom_call.1} parent=1 // pred_region
      %s93 = ssub.s32 512, 512
      %94 = vsyncadd [#allocation12], %s93
      %s95 = sshll.u32 [#allocation13], 4
      %s96 = int_to_ptr.vmem [resolvable:$true] %s95
      %101 = dma.hbm_to_vmem [thread:$0]  %s6, 512, %s96, [#allocation12], 128, 128, 8
    $region29: #{tpu_custom_call.1} parent=1 // pred_fallthru
      _
    // Predicated region
    $region30: #{tpu_custom_call.1} parent=1 // pred_check
      _
    $region31: #{tpu_custom_call.1} parent=1 // pred_check_branch
      %103 = sbr.rel (0) target = $region33
    $region32: #{tpu_custom_call.1} parent=1 // pred_region
      %s105 = ssub.s32 64, 64
      %106 = vsyncadd [#allocation15], %s105
      %s108 = sshll.u32 [#allocation14], 4
      %s109 = int_to_ptr.vmem [resolvable:$true] %s108
      %111 = dma.hbm_to_vmem [thread:$0]  %s7, 64, %s109, [#allocation15]
    $region33: #{tpu_custom_call.1} parent=1 // pred_fallthru
      _
    // Predicated region
    $region34: #{tpu_custom_call.1} parent=1 // pred_check
      _
    $region35: #{tpu_custom_call.1} parent=1 // pred_check_branch
      %113 = sbr.rel (0) target = $region37
    $region36: #{tpu_custom_call.1} parent=1 // pred_region
      %s115 = ssub.s32 64, 64
      %116 = vsyncadd [#allocation15], %s115
      %s118 = sshll.u32 [#allocation16], 4
      %s119 = int_to_ptr.vmem [resolvable:$true] %s118
      %121 = dma.hbm_to_vmem [thread:$0]  %s8, 64, %s119, [#allocation15]
    $region37: #{tpu_custom_call.1} parent=1 // pred_fallthru
      _
    // Predicated region
    $region38: #{tpu_custom_call.1} parent=1 // pred_check
      _
    $region39: #{tpu_custom_call.1} parent=1 // pred_check_branch
      %123 = sbr.rel (0) target = $region41
    $region40: #{tpu_custom_call.1} parent=1 // pred_region
      %124 = dma.done [#allocation3], 96
    $region41: #{tpu_custom_call.1} parent=1 // pred_fallthru
      _
    // Predicated region
    $region42: #{tpu_custom_call.1} parent=1 // pred_check
      _
    $region43: #{tpu_custom_call.1} parent=1 // pred_check_branch
      %126 = sbr.rel (0) target = $region45
    $region44: #{tpu_custom_call.1} parent=1 // pred_region
      %127 = dma.done [#allocation6], 512
    $region45: #{tpu_custom_call.1} parent=1 // pred_fallthru
      _
    // Predicated region
    $region46: #{tpu_custom_call.1} parent=1 // pred_check
      _
    $region47: #{tpu_custom_call.1} parent=1 // pred_check_branch
      %129 = sbr.rel (0) target = $region49
    $region48: #{tpu_custom_call.1} parent=1 // pred_region
      %130 = dma.done [#allocation6], 512
    $region49: #{tpu_custom_call.1} parent=1 // pred_fallthru
      _
    // Predicated region
    $region50: #{tpu_custom_call.1} parent=1 // pred_check
      _
    $region51: #{tpu_custom_call.1} parent=1 // pred_check_branch
      %132 = sbr.rel (0) target = $region53
    $region52: #{tpu_custom_call.1} parent=1 // pred_region
      %133 = dma.done [#allocation9], 512
    $region53: #{tpu_custom_call.1} parent=1 // pred_fallthru
      _
    // Predicated region
    $region54: #{tpu_custom_call.1} parent=1 // pred_check
      _
    $region55: #{tpu_custom_call.1} parent=1 // pred_check_branch
      %135 = sbr.rel (0) target = $region57
    $region56: #{tpu_custom_call.1} parent=1 // pred_region
      %136 = dma.done [#allocation9], 512
    $region57: #{tpu_custom_call.1} parent=1 // pred_fallthru
      _
    // Predicated region
    $region58: #{tpu_custom_call.1} parent=1 // pred_check
      _
    $region59: #{tpu_custom_call.1} parent=1 // pred_check_branch
      %138 = sbr.rel (0) target = $region61
    $region60: #{tpu_custom_call.1} parent=1 // pred_region
      %139 = dma.done [#allocation12], 512
    $region61: #{tpu_custom_call.1} parent=1 // pred_fallthru
      _
    // Predicated region
    $region62: #{tpu_custom_call.1} parent=1 // pred_check
      _
    $region63: #{tpu_custom_call.1} parent=1 // pred_check_branch
      %141 = sbr.rel (0) target = $region65
    $region64: #{tpu_custom_call.1} parent=1 // pred_region
      %142 = dma.done [#allocation12], 512
    $region65: #{tpu_custom_call.1} parent=1 // pred_fallthru
      _
    // Predicated region
    $region66: #{tpu_custom_call.1} parent=1 // pred_check
      _
    $region67: #{tpu_custom_call.1} parent=1 // pred_check_branch
      %144 = sbr.rel (0) target = $region69
    $region68: #{tpu_custom_call.1} parent=1 // pred_region
      %145 = dma.done [#allocation15], 64
    $region69: #{tpu_custom_call.1} parent=1 // pred_fallthru
      _
    // Predicated region
    $region70: #{tpu_custom_call.1} parent=1 // pred_check
      _
    $region71: #{tpu_custom_call.1} parent=1 // pred_check_branch
      %147 = sbr.rel (0) target = $region73
    $region72: #{tpu_custom_call.1} parent=1 // pred_region
      %148 = dma.done [#allocation15], 64
    $region73: #{tpu_custom_call.1} parent=1 // pred_fallthru
      _
    %v149 = vld [vmem:[#allocation2] sm:$0x3f]
    %v150 = vld [vmem:[#allocation5] sm:$0xff]
    %v151 = vld [vmem:[#allocation5 + $0x8] sm:$0xff]
    %v152 = vld [vmem:[#allocation5 + $0x10] sm:$0xff]
    %v153 = vld [vmem:[#allocation5 + $0x18] sm:$0xff]
    %v154 = vld [vmem:[#allocation7] sm:$0xff]
    %v155 = vld [vmem:[#allocation7 + $0x8] sm:$0xff]
    %v156 = vld [vmem:[#allocation7 + $0x10] sm:$0xff]
    %v157 = vld [vmem:[#allocation7 + $0x18] sm:$0xff]
    %159 = vset.pattern.permute.xlu0 0
    %160 = vperm.xlu0 %159, %v154
    %v161 = vpop.permute.xlu0 %160
    %164 = vset.pattern.permute.xlu0 0
    %165 = vperm.xlu0 %164, %v155
    %v166 = vpop.permute.xlu0 %165
    %169 = vset.pattern.permute.xlu0 0
    %170 = vperm.xlu0 %169, %v156
    %v171 = vpop.permute.xlu0 %170
    %174 = vset.pattern.permute.xlu0 0
    %175 = vperm.xlu0 %174, %v157
    %v176 = vpop.permute.xlu0 %175
    %v179 = vcombine.high %v149, %v149
    %v181 = vunpack.c.l.s4 1983009808
    %v182 = vunpack.c.0.s8 %v181
    %v183 = vlaneseq
    %v184 = vshrl.u32 %v183, 7
    %v185 = vsub.s32 %v182, %v184
    %v186 = vrot.slane %v149, %v185
    %v188 = vunpack.c.l.s4 1983009808
    %v189 = vunpack.c.0.s8 %v188
    %v190 = vlaneseq
    %v191 = vshrl.u32 %v190, 7
    %v192 = vsub.s32 %v189, %v191
    %v193 = vrot.slane %v179, %v192
    %v194 = vcombine.high %v186, %v186
    %vm195 = vcmask 15360
    %v197 = vsel %vm195, %v150, 0
    %v200 = vsel %vm195, %v151, 0
    %v203 = vsel %vm195, %v152, 0
    %v206 = vsel %vm195, %v153, 0
    %vm208 = vcmask 1041408
    %v209 = vsel %vm208, %v186, 0
    %v211 = vsel %vm208, %v194, 0
    %v213 = vsel %vm208, %v193, 0
    %215 = vmatprep.subr.mxu0 %v211
    %216 = vmatpush1.msra.mxu0 %v209
    %217 = vmatprep.subr.mxu0 0.0
    %218 = vmatpush1.msra.mxu0 0.0
    %219 = vmatprep.subr.mxu0 0.0
    %220 = vmatpush1.msra.mxu0 0.0
    %221 = vmatprep.subr.mxu0 0.0
    %222 = vmatpush1.msra.mxu0 0.0
    %223 = vmatprep.subr.mxu0 0.0
    %224 = vmatpush1.msra.mxu0 0.0
    %225 = vmatprep.subr.mxu0 0.0
    %226 = vmatpush1.msra.mxu0 0.0
    %227 = vmatprep.subr.mxu0 0.0
    %228 = vmatpush1.msra.mxu0 0.0
    %229 = vmatprep.subr.mxu0 0.0
    %230 = vmatpush1.msra.mxu0 0.0
    %231 = vmatprep.subr.mxu0 0.0
    %232 = vmatpush1.msra.mxu0 0.0
    %233 = vmatprep.subr.mxu0 0.0
    %234 = vmatpush1.msra.mxu0 0.0
    %235 = vmatprep.subr.mxu0 0.0
    %236 = vmatpush1.msra.mxu0 0.0
    %237 = vmatprep.subr.mxu0 0.0
    %238 = vmatpush1.msra.mxu0 0.0
    %239 = vmatprep.subr.mxu0 0.0
    %240 = vmatpush1.msra.mxu0 0.0
    %241 = vmatprep.subr.mxu0 0.0
    %242 = vmatpush1.msra.mxu0 0.0
    %243 = vmatprep.subr.mxu0 0.0
    %244 = vmatpush1.msra.mxu0 0.0
    %245 = vmatprep.subr.mxu0 0.0
    %246 = vmatpush1.msra.mxu0 0.0
    %247 = vmatprep.subr.mxu0 0.0
    %248 = vmatpush1.msra.mxu0 0.0
    %249 = vmatprep.subr.mxu0 0.0
    %250 = vmatpush1.msra.mxu0 0.0
    %251 = vmatprep.subr.mxu0 0.0
    %252 = vmatpush1.msra.mxu0 0.0
    %253 = vmatprep.subr.mxu0 0.0
    %254 = vmatpush1.msra.mxu0 0.0
    %255 = vmatprep.subr.mxu0 0.0
    %256 = vmatpush1.msra.mxu0 0.0
    %257 = vmatprep.subr.mxu0 0.0
    %258 = vmatpush1.msra.mxu0 0.0
    %259 = vmatprep.subr.mxu0 0.0
    %260 = vmatpush1.msra.mxu0 0.0
    %261 = vmatprep.subr.mxu0 0.0
    %262 = vmatpush1.msra.mxu0 0.0
    %263 = vmatprep.subr.mxu0 0.0
    %264 = vmatpush1.msra.mxu0 0.0
    %265 = vmatprep.subr.mxu0 0.0
    %266 = vmatpush1.msra.mxu0 0.0
    %267 = vmatprep.subr.mxu0 0.0
    %268 = vmatpush1.msra.mxu0 0.0
    %269 = vmatprep.subr.mxu0 0.0
    %270 = vmatpush1.msra.mxu0 0.0
    %271 = vmatprep.subr.mxu0 0.0
    %272 = vmatpush1.msra.mxu0 0.0
    %273 = vmatprep.subr.mxu0 0.0
    %274 = vmatpush1.msra.mxu0 0.0
    %275 = vmatprep.subr.mxu0 0.0
    %276 = vmatpush1.msra.mxu0 0.0
    %277 = vmatprep.subr.mxu0 0.0
    %278 = vmatpush1.msra.mxu0 0.0
    %279 = vmatprep.mubr.f32.mxu0 0.0
    %280 = vmatmul.mubr.f32.gmra.mrb[0].mxu0 %v197
    %v281 = vpop.f32.mrb[0].mxu0
    %v282 = vadd.f32 %v161, %v281
    %v283 = vpop.f32.mrb[0].mxu0
    %v284 = vadd.f32 %v161, %v283
    %285 = vmatprep.mubr.f32.mxu0 0.0
    %286 = vmatmul.mubr.f32.gmra.mrb[0].mxu0 %v200
    %v287 = vpop.f32.mrb[0].mxu0
    %v288 = vadd.f32 %v166, %v287
    %v289 = vpop.f32.mrb[0].mxu0
    %v290 = vadd.f32 %v166, %v289
    %291 = vmatprep.mubr.f32.mxu0 0.0
    %292 = vmatmul.mubr.f32.gmra.mrb[0].mxu0 %v203
    %v293 = vpop.f32.mrb[0].mxu0
    %v294 = vadd.f32 %v171, %v293
    %v295 = vpop.f32.mrb[0].mxu0
    %v296 = vadd.f32 %v171, %v295
    %297 = vmatprep.mubr.f32.mxu0 0.0
    %298 = vmatmul.mubr.f32.gmra.mrb[0].mxu0 %v206
    %v299 = vpop.f32.mrb[0].mxu0
    %v300 = vadd.f32 %v176, %v299
    %v301 = vpop.f32.mrb[0].mxu0
    %v302 = vadd.f32 %v176, %v301
    %303 = vdwg.mxu0
    %304 = vmatprep.subr.mxu0 0.0
    %305 = vmatpush1.msra.mxu0 %v213
    %306 = vmatprep.subr.mxu0 0.0
    %307 = vmatpush1.msra.mxu0 0.0
    %308 = vmatprep.subr.mxu0 0.0
    %309 = vmatpush1.msra.mxu0 0.0
    %310 = vmatprep.subr.mxu0 0.0
    %311 = vmatpush1.msra.mxu0 0.0
    %312 = vmatprep.subr.mxu0 0.0
    %313 = vmatpush1.msra.mxu0 0.0
    %314 = vmatprep.subr.mxu0 0.0
    %315 = vmatpush1.msra.mxu0 0.0
    %316 = vmatprep.subr.mxu0 0.0
    %317 = vmatpush1.msra.mxu0 0.0
    %318 = vmatprep.subr.mxu0 0.0
    %319 = vmatpush1.msra.mxu0 0.0
    %320 = vmatprep.subr.mxu0 0.0
    %321 = vmatpush1.msra.mxu0 0.0
    %322 = vmatprep.subr.mxu0 0.0
    %323 = vmatpush1.msra.mxu0 0.0
    %324 = vmatprep.subr.mxu0 0.0
    %325 = vmatpush1.msra.mxu0 0.0
    %326 = vmatprep.subr.mxu0 0.0
    %327 = vmatpush1.msra.mxu0 0.0
    %328 = vmatprep.subr.mxu0 0.0
    %329 = vmatpush1.msra.mxu0 0.0
    %330 = vmatprep.subr.mxu0 0.0
    %331 = vmatpush1.msra.mxu0 0.0
    %332 = vmatprep.subr.mxu0 0.0
    %333 = vmatpush1.msra.mxu0 0.0
    %334 = vmatprep.subr.mxu0 0.0
    %335 = vmatpush1.msra.mxu0 0.0
    %336 = vmatprep.subr.mxu0 0.0
    %337 = vmatpush1.msra.mxu0 0.0
    %338 = vmatprep.subr.mxu0 0.0
    %339 = vmatpush1.msra.mxu0 0.0
    %340 = vmatprep.subr.mxu0 0.0
    %341 = vmatpush1.msra.mxu0 0.0
    %342 = vmatprep.subr.mxu0 0.0
    %343 = vmatpush1.msra.mxu0 0.0
    %344 = vmatprep.subr.mxu0 0.0
    %345 = vmatpush1.msra.mxu0 0.0
    %346 = vmatprep.subr.mxu0 0.0
    %347 = vmatpush1.msra.mxu0 0.0
    %348 = vmatprep.subr.mxu0 0.0
    %349 = vmatpush1.msra.mxu0 0.0
    %350 = vmatprep.subr.mxu0 0.0
    %351 = vmatpush1.msra.mxu0 0.0
    %352 = vmatprep.subr.mxu0 0.0
    %353 = vmatpush1.msra.mxu0 0.0
    %354 = vmatprep.subr.mxu0 0.0
    %355 = vmatpush1.msra.mxu0 0.0
    %356 = vmatprep.subr.mxu0 0.0
    %357 = vmatpush1.msra.mxu0 0.0
    %358 = vmatprep.subr.mxu0 0.0
    %359 = vmatpush1.msra.mxu0 0.0
    %360 = vmatprep.subr.mxu0 0.0
    %361 = vmatpush1.msra.mxu0 0.0
    %362 = vmatprep.subr.mxu0 0.0
    %363 = vmatpush1.msra.mxu0 0.0
    %364 = vmatprep.subr.mxu0 0.0
    %365 = vmatpush1.msra.mxu0 0.0
    %366 = vmatprep.subr.mxu0 0.0
    %367 = vmatpush1.msra.mxu0 0.0
    %368 = vmatprep.mubr.f32.mxu0 0.0
    %369 = vmatmul.mubr.f32.gmra.mrb[0].mxu0 %v197
    %v370 = vpop.f32.mrb[0].mxu0
    %v371 = vadd.f32 %v161, %v370
    %v372 = vpop.f32.mrb[0].mxu0
    %373 = vmatprep.mubr.f32.mxu0 0.0
    %374 = vmatmul.mubr.f32.gmra.mrb[0].mxu0 %v200
    %v375 = vpop.f32.mrb[0].mxu0
    %v376 = vadd.f32 %v166, %v375
    %v377 = vpop.f32.mrb[0].mxu0
    %378 = vmatprep.mubr.f32.mxu0 0.0
    %379 = vmatmul.mubr.f32.gmra.mrb[0].mxu0 %v203
    %v380 = vpop.f32.mrb[0].mxu0
    %v381 = vadd.f32 %v171, %v380
    %v382 = vpop.f32.mrb[0].mxu0
    %383 = vmatprep.mubr.f32.mxu0 0.0
    %384 = vmatmul.mubr.f32.gmra.mrb[0].mxu0 %v206
    %v385 = vpop.f32.mrb[0].mxu0
    %v386 = vadd.f32 %v176, %v385
    %v387 = vpop.f32.mrb[0].mxu0
    %388 = vdwg.mxu0
    %v389 = vmul.f32 %v282, 0.15915494
    %v390 = vmul.f32 %v284, 0.15915494
    %v391 = vmul.f32 %v371, 0.15915494
    %v392 = vmul.f32 %v288, 0.15915494
    %v393 = vmul.f32 %v290, 0.15915494
    %v394 = vmul.f32 %v376, 0.15915494
    %v395 = vmul.f32 %v294, 0.15915494
    %v396 = vmul.f32 %v296, 0.15915494
    %v397 = vmul.f32 %v381, 0.15915494
    %v398 = vmul.f32 %v300, 0.15915494
    %v399 = vmul.f32 %v302, 0.15915494
    %v400 = vmul.f32 %v386, 0.15915494
    %v401 = vadd.f32 %v389, 0.5
    %v402 = vadd.f32 %v390, 0.5
    %v403 = vadd.f32 %v391, 0.5
    %v404 = vadd.f32 %v392, 0.5
    %v405 = vadd.f32 %v393, 0.5
    %v406 = vadd.f32 %v394, 0.5
    %v407 = vadd.f32 %v395, 0.5
    %v408 = vadd.f32 %v396, 0.5
    %v409 = vadd.f32 %v397, 0.5
    %v410 = vadd.f32 %v398, 0.5
    %v411 = vadd.f32 %v399, 0.5
    %v412 = vadd.f32 %v400, 0.5
    %v413 = vfloor.f32 %v401
    %v414 = vfloor.f32 %v402
    %v415 = vfloor.f32 %v403
    %v416 = vfloor.f32 %v404
    %v417 = vfloor.f32 %v405
    %v418 = vfloor.f32 %v406
    %v419 = vfloor.f32 %v407
    %v420 = vfloor.f32 %v408
    %v421 = vfloor.f32 %v409
    %v422 = vfloor.f32 %v410
    %v423 = vfloor.f32 %v411
    %v424 = vfloor.f32 %v412
    %v425 = vmul.f32 %v413, 6.28125
    %v426 = vmul.f32 %v414, 6.28125
    %v427 = vmul.f32 %v415, 6.28125
    %v428 = vmul.f32 %v416, 6.28125
    %v429 = vmul.f32 %v417, 6.28125
    %v430 = vmul.f32 %v418, 6.28125
    %v431 = vmul.f32 %v419, 6.28125
    %v432 = vmul.f32 %v420, 6.28125
    %v433 = vmul.f32 %v421, 6.28125
    %v434 = vmul.f32 %v422, 6.28125
    %v435 = vmul.f32 %v423, 6.28125
    %v436 = vmul.f32 %v424, 6.28125
    %v437 = vsub.f32 %v282, %v425
    %v438 = vsub.f32 %v284, %v426
    %v439 = vsub.f32 %v371, %v427
    %v440 = vsub.f32 %v288, %v428
    %v441 = vsub.f32 %v290, %v429
    %v442 = vsub.f32 %v376, %v430
    %v443 = vsub.f32 %v294, %v431
    %v444 = vsub.f32 %v296, %v432
    %v445 = vsub.f32 %v381, %v433
    %v446 = vsub.f32 %v300, %v434
    %v447 = vsub.f32 %v302, %v435
    %v448 = vsub.f32 %v386, %v436
    %v449 = vmul.f32 %v413, 0.0019353072
    %v450 = vmul.f32 %v414, 0.0019353072
    %v451 = vmul.f32 %v415, 0.0019353072
    %v452 = vmul.f32 %v416, 0.0019353072
    %v453 = vmul.f32 %v417, 0.0019353072
    %v454 = vmul.f32 %v418, 0.0019353072
    %v455 = vmul.f32 %v419, 0.0019353072
    %v456 = vmul.f32 %v420, 0.0019353072
    %v457 = vmul.f32 %v421, 0.0019353072
    %v458 = vmul.f32 %v422, 0.0019353072
    %v459 = vmul.f32 %v423, 0.0019353072
    %v460 = vmul.f32 %v424, 0.0019353072
    %v461 = vsub.f32 %v437, %v449
    %v462 = vsub.f32 %v438, %v450
    %v463 = vsub.f32 %v439, %v451
    %v464 = vsub.f32 %v440, %v452
    %v465 = vsub.f32 %v441, %v453
    %v466 = vsub.f32 %v442, %v454
    %v467 = vsub.f32 %v443, %v455
    %v468 = vsub.f32 %v444, %v456
    %v469 = vsub.f32 %v445, %v457
    %v470 = vsub.f32 %v446, %v458
    %v471 = vsub.f32 %v447, %v459
    %v472 = vsub.f32 %v448, %v460
    %v473 = vmul.f32 %v461, %v461
    %v474 = vmul.f32 %v462, %v462
    %v475 = vmul.f32 %v463, %v463
    %v476 = vmul.f32 %v464, %v464
    %v477 = vmul.f32 %v465, %v465
    %v478 = vmul.f32 %v466, %v466
    %v479 = vmul.f32 %v467, %v467
    %v480 = vmul.f32 %v468, %v468
    %v481 = vmul.f32 %v469, %v469
    %v482 = vmul.f32 %v470, %v470
    %v483 = vmul.f32 %v471, %v471
    %v484 = vmul.f32 %v472, %v472
    %v485 = vmul.f32 %v473, -7.6471636e-13
    %v486 = vmul.f32 %v474, -7.6471636e-13
    %v487 = vmul.f32 %v475, -7.6471636e-13
    %v488 = vmul.f32 %v476, -7.6471636e-13
    %v489 = vmul.f32 %v477, -7.6471636e-13
    %v490 = vmul.f32 %v478, -7.6471636e-13
    %v491 = vmul.f32 %v479, -7.6471636e-13
    %v492 = vmul.f32 %v480, -7.6471636e-13
    %v493 = vmul.f32 %v481, -7.6471636e-13
    %v494 = vmul.f32 %v482, -7.6471636e-13
    %v495 = vmul.f32 %v483, -7.6471636e-13
    %v496 = vmul.f32 %v484, -7.6471636e-13
    %v497 = vadd.f32 %v485, 1.6059044e-10
    %v498 = vadd.f32 %v486, 1.6059044e-10
    %v499 = vadd.f32 %v487, 1.6059044e-10
    %v500 = vadd.f32 %v488, 1.6059044e-10
    %v501 = vadd.f32 %v489, 1.6059044e-10
    %v502 = vadd.f32 %v490, 1.6059044e-10
    %v503 = vadd.f32 %v491, 1.6059044e-10
    %v504 = vadd.f32 %v492, 1.6059044e-10
    %v505 = vadd.f32 %v493, 1.6059044e-10
    %v506 = vadd.f32 %v494, 1.6059044e-10
    %v507 = vadd.f32 %v495, 1.6059044e-10
    %v508 = vadd.f32 %v496, 1.6059044e-10
    %v509 = vmul.f32 %v497, %v473
    %v510 = vmul.f32 %v498, %v474
    %v511 = vmul.f32 %v499, %v475
    %v512 = vmul.f32 %v500, %v476
    %v513 = vmul.f32 %v501, %v477
    %v514 = vmul.f32 %v502, %v478
    %v515 = vmul.f32 %v503, %v479
    %v516 = vmul.f32 %v504, %v480
    %v517 = vmul.f32 %v505, %v481
    %v518 = vmul.f32 %v506, %v482
    %v519 = vmul.f32 %v507, %v483
    %v520 = vmul.f32 %v508, %v484
    %v521 = vsub.f32 %v509, 2.5052108e-08
    %v522 = vsub.f32 %v510, 2.5052108e-08
    %v523 = vsub.f32 %v511, 2.5052108e-08
    %v524 = vsub.f32 %v512, 2.5052108e-08
    %v525 = vsub.f32 %v513, 2.5052108e-08
    %v526 = vsub.f32 %v514, 2.5052108e-08
    %v527 = vsub.f32 %v515, 2.5052108e-08
    %v528 = vsub.f32 %v516, 2.5052108e-08
    %v529 = vsub.f32 %v517, 2.5052108e-08
    %v530 = vsub.f32 %v518, 2.5052108e-08
    %v531 = vsub.f32 %v519, 2.5052108e-08
    %v532 = vsub.f32 %v520, 2.5052108e-08
    %v533 = vmul.f32 %v521, %v473
    %v534 = vmul.f32 %v522, %v474
    %v535 = vmul.f32 %v523, %v475
    %v536 = vmul.f32 %v524, %v476
    %v537 = vmul.f32 %v525, %v477
    %v538 = vmul.f32 %v526, %v478
    %v539 = vmul.f32 %v527, %v479
    %v540 = vmul.f32 %v528, %v480
    %v541 = vmul.f32 %v529, %v481
    %v542 = vmul.f32 %v530, %v482
    %v543 = vmul.f32 %v531, %v483
    %v544 = vmul.f32 %v532, %v484
    %v545 = vadd.f32 %v533, 2.7557319e-06
    %v546 = vadd.f32 %v534, 2.7557319e-06
    %v547 = vadd.f32 %v535, 2.7557319e-06
    %v548 = vadd.f32 %v536, 2.7557319e-06
    %v549 = vadd.f32 %v537, 2.7557319e-06
    %v550 = vadd.f32 %v538, 2.7557319e-06
    %v551 = vadd.f32 %v539, 2.7557319e-06
    %v552 = vadd.f32 %v540, 2.7557319e-06
    %v553 = vadd.f32 %v541, 2.7557319e-06
    %v554 = vadd.f32 %v542, 2.7557319e-06
    %v555 = vadd.f32 %v543, 2.7557319e-06
    %v556 = vadd.f32 %v544, 2.7557319e-06
    %v557 = vmul.f32 %v545, %v473
    %v558 = vmul.f32 %v546, %v474
    %v559 = vmul.f32 %v547, %v475
    %v560 = vmul.f32 %v548, %v476
    %v561 = vmul.f32 %v549, %v477
    %v562 = vmul.f32 %v550, %v478
    %v563 = vmul.f32 %v551, %v479
    %v564 = vmul.f32 %v552, %v480
    %v565 = vmul.f32 %v553, %v481
    %v566 = vmul.f32 %v554, %v482
    %v567 = vmul.f32 %v555, %v483
    %v568 = vmul.f32 %v556, %v484
    %v569 = vsub.f32 %v557, 0.0001984127
    %v570 = vsub.f32 %v558, 0.0001984127
    %v571 = vsub.f32 %v559, 0.0001984127
    %v572 = vsub.f32 %v560, 0.0001984127
    %v573 = vsub.f32 %v561, 0.0001984127
    %v574 = vsub.f32 %v562, 0.0001984127
    %v575 = vsub.f32 %v563, 0.0001984127
    %v576 = vsub.f32 %v564, 0.0001984127
    %v577 = vsub.f32 %v565, 0.0001984127
    %v578 = vsub.f32 %v566, 0.0001984127
    %v579 = vsub.f32 %v567, 0.0001984127
    %v580 = vsub.f32 %v568, 0.0001984127
    %v581 = vmul.f32 %v569, %v473
    %v582 = vmul.f32 %v570, %v474
    %v583 = vmul.f32 %v571, %v475
    %v584 = vmul.f32 %v572, %v476
    %v585 = vmul.f32 %v573, %v477
    %v586 = vmul.f32 %v574, %v478
    %v587 = vmul.f32 %v575, %v479
    %v588 = vmul.f32 %v576, %v480
    %v589 = vmul.f32 %v577, %v481
    %v590 = vmul.f32 %v578, %v482
    %v591 = vmul.f32 %v579, %v483
    %v592 = vmul.f32 %v580, %v484
    %v593 = vadd.f32 %v581, 0.008333334
    %v594 = vadd.f32 %v582, 0.008333334
    %v595 = vadd.f32 %v583, 0.008333334
    %v596 = vadd.f32 %v584, 0.008333334
    %v597 = vadd.f32 %v585, 0.008333334
    %v598 = vadd.f32 %v586, 0.008333334
    %v599 = vadd.f32 %v587, 0.008333334
    %v600 = vadd.f32 %v588, 0.008333334
    %v601 = vadd.f32 %v589, 0.008333334
    %v602 = vadd.f32 %v590, 0.008333334
    %v603 = vadd.f32 %v591, 0.008333334
    %v604 = vadd.f32 %v592, 0.008333334
    %v605 = vmul.f32 %v593, %v473
    %v606 = vmul.f32 %v594, %v474
    %v607 = vmul.f32 %v595, %v475
    %v608 = vmul.f32 %v596, %v476
    %v609 = vmul.f32 %v597, %v477
    %v610 = vmul.f32 %v598, %v478
    %v611 = vmul.f32 %v599, %v479
    %v612 = vmul.f32 %v600, %v480
    %v613 = vmul.f32 %v601, %v481
    %v614 = vmul.f32 %v602, %v482
    %v615 = vmul.f32 %v603, %v483
    %v616 = vmul.f32 %v604, %v484
    %v617 = vsub.f32 %v605, 0.16666667
    %v618 = vsub.f32 %v606, 0.16666667
    %v619 = vsub.f32 %v607, 0.16666667
    %v620 = vsub.f32 %v608, 0.16666667
    %v621 = vsub.f32 %v609, 0.16666667
    %v622 = vsub.f32 %v610, 0.16666667
    %v623 = vsub.f32 %v611, 0.16666667
    %v624 = vsub.f32 %v612, 0.16666667
    %v625 = vsub.f32 %v613, 0.16666667
    %v626 = vsub.f32 %v614, 0.16666667
    %v627 = vsub.f32 %v615, 0.16666667
    %v628 = vsub.f32 %v616, 0.16666667
    %v629 = vmul.f32 %v473, %v617
    %v630 = vmul.f32 %v474, %v618
    %v631 = vmul.f32 %v475, %v619
    %v632 = vmul.f32 %v476, %v620
    %v633 = vmul.f32 %v477, %v621
    %v634 = vmul.f32 %v478, %v622
    %v635 = vmul.f32 %v479, %v623
    %v636 = vmul.f32 %v480, %v624
    %v637 = vmul.f32 %v481, %v625
    %v638 = vmul.f32 %v482, %v626
    %v639 = vmul.f32 %v483, %v627
    %v640 = vmul.f32 %v484, %v628
    %v641 = vadd.f32 %v629, 1.0
    %v642 = vadd.f32 %v630, 1.0
    %v643 = vadd.f32 %v631, 1.0
    %v644 = vadd.f32 %v632, 1.0
    %v645 = vadd.f32 %v633, 1.0
    %v646 = vadd.f32 %v634, 1.0
    %v647 = vadd.f32 %v635, 1.0
    %v648 = vadd.f32 %v636, 1.0
    %v649 = vadd.f32 %v637, 1.0
    %v650 = vadd.f32 %v638, 1.0
    %v651 = vadd.f32 %v639, 1.0
    %v652 = vadd.f32 %v640, 1.0
    %v653 = vmul.f32 %v461, %v641
    %v654 = vmul.f32 %v462, %v642
    %v655 = vmul.f32 %v463, %v643
    %v656 = vmul.f32 %v464, %v644
    %v657 = vmul.f32 %v465, %v645
    %v658 = vmul.f32 %v466, %v646
    %v659 = vmul.f32 %v467, %v647
    %v660 = vmul.f32 %v468, %v648
    %v661 = vmul.f32 %v469, %v649
    %v662 = vmul.f32 %v470, %v650
    %v663 = vmul.f32 %v471, %v651
    %v664 = vmul.f32 %v472, %v652
    %v665 = vld [vmem:[#allocation8] sm:$0xff]
    %v666 = vld [vmem:[#allocation8 + $0x8] sm:$0xff]
    %v667 = vld [vmem:[#allocation8 + $0x10] sm:$0xff]
    %v668 = vld [vmem:[#allocation8 + $0x18] sm:$0xff]
    %v669 = vld [vmem:[#allocation10] sm:$0xff]
    %v670 = vld [vmem:[#allocation10 + $0x8] sm:$0xff]
    %v671 = vld [vmem:[#allocation10 + $0x10] sm:$0xff]
    %v672 = vld [vmem:[#allocation10 + $0x18] sm:$0xff]
    %674 = vset.pattern.permute.xlu0 0
    %675 = vperm.xlu0 %674, %v669
    %v676 = vpop.permute.xlu0 %675
    %679 = vset.pattern.permute.xlu0 0
    %680 = vperm.xlu0 %679, %v670
    %v681 = vpop.permute.xlu0 %680
    %684 = vset.pattern.permute.xlu0 0
    %685 = vperm.xlu0 %684, %v671
    %v686 = vpop.permute.xlu0 %685
    %689 = vset.pattern.permute.xlu0 0
    %690 = vperm.xlu0 %689, %v672
    %v691 = vpop.permute.xlu0 %690
    %vm693 = vcmask 261120
    %v695 = vsel %vm693, %v665, 0
    %v698 = vsel %vm693, %v666, 0
    %v701 = vsel %vm693, %v667, 0
    %v704 = vsel %vm693, %v668, 0
    %706 = vmatprep.subr.mxu0 %v654
    %707 = vmatpush1.msra.mxu0 %v653
    %708 = vmatprep.subr.mxu0 %v657
    %709 = vmatpush1.msra.mxu0 %v656
    %710 = vmatprep.subr.mxu0 %v660
    %711 = vmatpush1.msra.mxu0 %v659
    %712 = vmatprep.subr.mxu0 %v663
    %713 = vmatpush1.msra.mxu0 %v662
    %714 = vmatprep.subr.mxu0 0.0
    %715 = vmatpush1.msra.mxu0 0.0
    %716 = vmatprep.subr.mxu0 0.0
    %717 = vmatpush1.msra.mxu0 0.0
    %718 = vmatprep.subr.mxu0 0.0
    %719 = vmatpush1.msra.mxu0 0.0
    %720 = vmatprep.subr.mxu0 0.0
    %721 = vmatpush1.msra.mxu0 0.0
    %722 = vmatprep.subr.mxu0 0.0
    %723 = vmatpush1.msra.mxu0 0.0
    %724 = vmatprep.subr.mxu0 0.0
    %725 = vmatpush1.msra.mxu0 0.0
    %726 = vmatprep.subr.mxu0 0.0
    %727 = vmatpush1.msra.mxu0 0.0
    %728 = vmatprep.subr.mxu0 0.0
    %729 = vmatpush1.msra.mxu0 0.0
    %730 = vmatprep.subr.mxu0 0.0
    %731 = vmatpush1.msra.mxu0 0.0
    %732 = vmatprep.subr.mxu0 0.0
    %733 = vmatpush1.msra.mxu0 0.0
    %734 = vmatprep.subr.mxu0 0.0
    %735 = vmatpush1.msra.mxu0 0.0
    %736 = vmatprep.subr.mxu0 0.0
    %737 = vmatpush1.msra.mxu0 0.0
    %738 = vmatprep.subr.mxu0 0.0
    %739 = vmatpush1.msra.mxu0 0.0
    %740 = vmatprep.subr.mxu0 0.0
    %741 = vmatpush1.msra.mxu0 0.0
    %742 = vmatprep.subr.mxu0 0.0
    %743 = vmatpush1.msra.mxu0 0.0
    %744 = vmatprep.subr.mxu0 0.0
    %745 = vmatpush1.msra.mxu0 0.0
    %746 = vmatprep.subr.mxu0 0.0
    %747 = vmatpush1.msra.mxu0 0.0
    %748 = vmatprep.subr.mxu0 0.0
    %749 = vmatpush1.msra.mxu0 0.0
    %750 = vmatprep.subr.mxu0 0.0
    %751 = vmatpush1.msra.mxu0 0.0
    %752 = vmatprep.subr.mxu0 0.0
    %753 = vmatpush1.msra.mxu0 0.0
    %754 = vmatprep.subr.mxu0 0.0
    %755 = vmatpush1.msra.mxu0 0.0
    %756 = vmatprep.subr.mxu0 0.0
    %757 = vmatpush1.msra.mxu0 0.0
    %758 = vmatprep.subr.mxu0 0.0
    %759 = vmatpush1.msra.mxu0 0.0
    %760 = vmatprep.subr.mxu0 0.0
    %761 = vmatpush1.msra.mxu0 0.0
    %762 = vmatprep.subr.mxu0 0.0
    %763 = vmatpush1.msra.mxu0 0.0
    %764 = vmatprep.subr.mxu0 0.0
    %765 = vmatpush1.msra.mxu0 0.0
    %766 = vmatprep.subr.mxu0 0.0
    %767 = vmatpush1.msra.mxu0 0.0
    %768 = vmatprep.subr.mxu0 0.0
    %769 = vmatpush1.msra.mxu0 0.0
    %770 = vmatprep.mubr.f32.mxu0 0.0
    %771 = vmatmul.mubr.f32.gmra.mrb[0].mxu0 %v695
    %v772 = vpop.f32.mrb[0].mxu0
    %v773 = vadd.f32 %v676, %v772
    %v774 = vpop.f32.mrb[0].mxu0
    %v775 = vadd.f32 %v676, %v774
    %776 = vmatprep.mubr.f32.mxu0 0.0
    %777 = vmatmul.mubr.f32.gmra.mrb[0].mxu0 %v698
    %v778 = vpop.f32.mrb[0].mxu0
    %v779 = vadd.f32 %v681, %v778
    %v780 = vpop.f32.mrb[0].mxu0
    %v781 = vadd.f32 %v681, %v780
    %782 = vmatprep.mubr.f32.mxu0 0.0
    %783 = vmatmul.mubr.f32.gmra.mrb[0].mxu0 %v701
    %v784 = vpop.f32.mrb[0].mxu0
    %v785 = vadd.f32 %v686, %v784
    %v786 = vpop.f32.mrb[0].mxu0
    %v787 = vadd.f32 %v686, %v786
    %788 = vmatprep.mubr.f32.mxu0 0.0
    %789 = vmatmul.mubr.f32.gmra.mrb[0].mxu0 %v704
    %v790 = vpop.f32.mrb[0].mxu0
    %v791 = vadd.f32 %v691, %v790
    %v792 = vpop.f32.mrb[0].mxu0
    %v793 = vadd.f32 %v691, %v792
    %794 = vdwg.mxu0
    %795 = vmatprep.subr.mxu0 0.0
    %796 = vmatpush1.msra.mxu0 %v655
    %797 = vmatprep.subr.mxu0 0.0
    %798 = vmatpush1.msra.mxu0 %v658
    %799 = vmatprep.subr.mxu0 0.0
    %800 = vmatpush1.msra.mxu0 %v661
    %801 = vmatprep.subr.mxu0 0.0
    %802 = vmatpush1.msra.mxu0 %v664
    %803 = vmatprep.subr.mxu0 0.0
    %804 = vmatpush1.msra.mxu0 0.0
    %805 = vmatprep.subr.mxu0 0.0
    %806 = vmatpush1.msra.mxu0 0.0
    %807 = vmatprep.subr.mxu0 0.0
    %808 = vmatpush1.msra.mxu0 0.0
    %809 = vmatprep.subr.mxu0 0.0
    %810 = vmatpush1.msra.mxu0 0.0
    %811 = vmatprep.subr.mxu0 0.0
    %812 = vmatpush1.msra.mxu0 0.0
    %813 = vmatprep.subr.mxu0 0.0
    %814 = vmatpush1.msra.mxu0 0.0
    %815 = vmatprep.subr.mxu0 0.0
    %816 = vmatpush1.msra.mxu0 0.0
    %817 = vmatprep.subr.mxu0 0.0
    %818 = vmatpush1.msra.mxu0 0.0
    %819 = vmatprep.subr.mxu0 0.0
    %820 = vmatpush1.msra.mxu0 0.0
    %821 = vmatprep.subr.mxu0 0.0
    %822 = vmatpush1.msra.mxu0 0.0
    %823 = vmatprep.subr.mxu0 0.0
    %824 = vmatpush1.msra.mxu0 0.0
    %825 = vmatprep.subr.mxu0 0.0
    %826 = vmatpush1.msra.mxu0 0.0
    %827 = vmatprep.subr.mxu0 0.0
    %828 = vmatpush1.msra.mxu0 0.0
    %829 = vmatprep.subr.mxu0 0.0
    %830 = vmatpush1.msra.mxu0 0.0
    %831 = vmatprep.subr.mxu0 0.0
    %832 = vmatpush1.msra.mxu0 0.0
    %833 = vmatprep.subr.mxu0 0.0
    %834 = vmatpush1.msra.mxu0 0.0
    %835 = vmatprep.subr.mxu0 0.0
    %836 = vmatpush1.msra.mxu0 0.0
    %837 = vmatprep.subr.mxu0 0.0
    %838 = vmatpush1.msra.mxu0 0.0
    %839 = vmatprep.subr.mxu0 0.0
    %840 = vmatpush1.msra.mxu0 0.0
    %841 = vmatprep.subr.mxu0 0.0
    %842 = vmatpush1.msra.mxu0 0.0
    %843 = vmatprep.subr.mxu0 0.0
    %844 = vmatpush1.msra.mxu0 0.0
    %845 = vmatprep.subr.mxu0 0.0
    %846 = vmatpush1.msra.mxu0 0.0
    %847 = vmatprep.subr.mxu0 0.0
    %848 = vmatpush1.msra.mxu0 0.0
    %849 = vmatprep.subr.mxu0 0.0
    %850 = vmatpush1.msra.mxu0 0.0
    %851 = vmatprep.subr.mxu0 0.0
    %852 = vmatpush1.msra.mxu0 0.0
    %853 = vmatprep.subr.mxu0 0.0
    %854 = vmatpush1.msra.mxu0 0.0
    %855 = vmatprep.subr.mxu0 0.0
    %856 = vmatpush1.msra.mxu0 0.0
    %857 = vmatprep.subr.mxu0 0.0
    %858 = vmatpush1.msra.mxu0 0.0
    %859 = vmatprep.mubr.f32.mxu0 0.0
    %860 = vmatmul.mubr.f32.gmra.mrb[0].mxu0 %v695
    %v861 = vpop.f32.mrb[0].mxu0
    %v862 = vadd.f32 %v676, %v861
    %v863 = vpop.f32.mrb[0].mxu0
    %864 = vmatprep.mubr.f32.mxu0 0.0
    %865 = vmatmul.mubr.f32.gmra.mrb[0].mxu0 %v698
    %v866 = vpop.f32.mrb[0].mxu0
    %v867 = vadd.f32 %v681, %v866
    %v868 = vpop.f32.mrb[0].mxu0
    %869 = vmatprep.mubr.f32.mxu0 0.0
    %870 = vmatmul.mubr.f32.gmra.mrb[0].mxu0 %v701
    %v871 = vpop.f32.mrb[0].mxu0
    %v872 = vadd.f32 %v686, %v871
    %v873 = vpop.f32.mrb[0].mxu0
    %874 = vmatprep.mubr.f32.mxu0 0.0
    %875 = vmatmul.mubr.f32.gmra.mrb[0].mxu0 %v704
    %v876 = vpop.f32.mrb[0].mxu0
    %v877 = vadd.f32 %v691, %v876
    %v878 = vpop.f32.mrb[0].mxu0
    %879 = vdwg.mxu0
    %v880 = vmul.f32 %v773, 0.15915494
    %v881 = vmul.f32 %v775, 0.15915494
    %v882 = vmul.f32 %v862, 0.15915494
    %v883 = vmul.f32 %v779, 0.15915494
    %v884 = vmul.f32 %v781, 0.15915494
    %v885 = vmul.f32 %v867, 0.15915494
    %v886 = vmul.f32 %v785, 0.15915494
    %v887 = vmul.f32 %v787, 0.15915494
    %v888 = vmul.f32 %v872, 0.15915494
    %v889 = vmul.f32 %v791, 0.15915494
    %v890 = vmul.f32 %v793, 0.15915494
    %v891 = vmul.f32 %v877, 0.15915494
    %v892 = vadd.f32 %v880, 0.5
    %v893 = vadd.f32 %v881, 0.5
    %v894 = vadd.f32 %v882, 0.5
    %v895 = vadd.f32 %v883, 0.5
    %v896 = vadd.f32 %v884, 0.5
    %v897 = vadd.f32 %v885, 0.5
    %v898 = vadd.f32 %v886, 0.5
    %v899 = vadd.f32 %v887, 0.5
    %v900 = vadd.f32 %v888, 0.5
    %v901 = vadd.f32 %v889, 0.5
    %v902 = vadd.f32 %v890, 0.5
    %v903 = vadd.f32 %v891, 0.5
    %v904 = vfloor.f32 %v892
    %v905 = vfloor.f32 %v893
    %v906 = vfloor.f32 %v894
    %v907 = vfloor.f32 %v895
    %v908 = vfloor.f32 %v896
    %v909 = vfloor.f32 %v897
    %v910 = vfloor.f32 %v898
    %v911 = vfloor.f32 %v899
    %v912 = vfloor.f32 %v900
    %v913 = vfloor.f32 %v901
    %v914 = vfloor.f32 %v902
    %v915 = vfloor.f32 %v903
    %v916 = vmul.f32 %v904, 6.28125
    %v917 = vmul.f32 %v905, 6.28125
    %v918 = vmul.f32 %v906, 6.28125
    %v919 = vmul.f32 %v907, 6.28125
    %v920 = vmul.f32 %v908, 6.28125
    %v921 = vmul.f32 %v909, 6.28125
    %v922 = vmul.f32 %v910, 6.28125
    %v923 = vmul.f32 %v911, 6.28125
    %v924 = vmul.f32 %v912, 6.28125
    %v925 = vmul.f32 %v913, 6.28125
    %v926 = vmul.f32 %v914, 6.28125
    %v927 = vmul.f32 %v915, 6.28125
    %v928 = vsub.f32 %v773, %v916
    %v929 = vsub.f32 %v775, %v917
    %v930 = vsub.f32 %v862, %v918
    %v931 = vsub.f32 %v779, %v919
    %v932 = vsub.f32 %v781, %v920
    %v933 = vsub.f32 %v867, %v921
    %v934 = vsub.f32 %v785, %v922
    %v935 = vsub.f32 %v787, %v923
    %v936 = vsub.f32 %v872, %v924
    %v937 = vsub.f32 %v791, %v925
    %v938 = vsub.f32 %v793, %v926
    %v939 = vsub.f32 %v877, %v927
    %v940 = vmul.f32 %v904, 0.0019353072
    %v941 = vmul.f32 %v905, 0.0019353072
    %v942 = vmul.f32 %v906, 0.0019353072
    %v943 = vmul.f32 %v907, 0.0019353072
    %v944 = vmul.f32 %v908, 0.0019353072
    %v945 = vmul.f32 %v909, 0.0019353072
    %v946 = vmul.f32 %v910, 0.0019353072
    %v947 = vmul.f32 %v911, 0.0019353072
    %v948 = vmul.f32 %v912, 0.0019353072
    %v949 = vmul.f32 %v913, 0.0019353072
    %v950 = vmul.f32 %v914, 0.0019353072
    %v951 = vmul.f32 %v915, 0.0019353072
    %v952 = vsub.f32 %v928, %v940
    %v953 = vsub.f32 %v929, %v941
    %v954 = vsub.f32 %v930, %v942
    %v955 = vsub.f32 %v931, %v943
    %v956 = vsub.f32 %v932, %v944
    %v957 = vsub.f32 %v933, %v945
    %v958 = vsub.f32 %v934, %v946
    %v959 = vsub.f32 %v935, %v947
    %v960 = vsub.f32 %v936, %v948
    %v961 = vsub.f32 %v937, %v949
    %v962 = vsub.f32 %v938, %v950
    %v963 = vsub.f32 %v939, %v951
    %v964 = vmul.f32 %v952, %v952
    %v965 = vmul.f32 %v953, %v953
    %v966 = vmul.f32 %v954, %v954
    %v967 = vmul.f32 %v955, %v955
    %v968 = vmul.f32 %v956, %v956
    %v969 = vmul.f32 %v957, %v957
    %v970 = vmul.f32 %v958, %v958
    %v971 = vmul.f32 %v959, %v959
    %v972 = vmul.f32 %v960, %v960
    %v973 = vmul.f32 %v961, %v961
    %v974 = vmul.f32 %v962, %v962
    %v975 = vmul.f32 %v963, %v963
    %v976 = vmul.f32 %v964, -7.6471636e-13
    %v977 = vmul.f32 %v965, -7.6471636e-13
    %v978 = vmul.f32 %v966, -7.6471636e-13
    %v979 = vmul.f32 %v967, -7.6471636e-13
    %v980 = vmul.f32 %v968, -7.6471636e-13
    %v981 = vmul.f32 %v969, -7.6471636e-13
    %v982 = vmul.f32 %v970, -7.6471636e-13
    %v983 = vmul.f32 %v971, -7.6471636e-13
    %v984 = vmul.f32 %v972, -7.6471636e-13
    %v985 = vmul.f32 %v973, -7.6471636e-13
    %v986 = vmul.f32 %v974, -7.6471636e-13
    %v987 = vmul.f32 %v975, -7.6471636e-13
    %v988 = vadd.f32 %v976, 1.6059044e-10
    %v989 = vadd.f32 %v977, 1.6059044e-10
    %v990 = vadd.f32 %v978, 1.6059044e-10
    %v991 = vadd.f32 %v979, 1.6059044e-10
    %v992 = vadd.f32 %v980, 1.6059044e-10
    %v993 = vadd.f32 %v981, 1.6059044e-10
    %v994 = vadd.f32 %v982, 1.6059044e-10
    %v995 = vadd.f32 %v983, 1.6059044e-10
    %v996 = vadd.f32 %v984, 1.6059044e-10
    %v997 = vadd.f32 %v985, 1.6059044e-10
    %v998 = vadd.f32 %v986, 1.6059044e-10
    %v999 = vadd.f32 %v987, 1.6059044e-10
    %v1000 = vmul.f32 %v988, %v964
    %v1001 = vmul.f32 %v989, %v965
    %v1002 = vmul.f32 %v990, %v966
    %v1003 = vmul.f32 %v991, %v967
    %v1004 = vmul.f32 %v992, %v968
    %v1005 = vmul.f32 %v993, %v969
    %v1006 = vmul.f32 %v994, %v970
    %v1007 = vmul.f32 %v995, %v971
    %v1008 = vmul.f32 %v996, %v972
    %v1009 = vmul.f32 %v997, %v973
    %v1010 = vmul.f32 %v998, %v974
    %v1011 = vmul.f32 %v999, %v975
    %v1012 = vsub.f32 %v1000, 2.5052108e-08
    %v1013 = vsub.f32 %v1001, 2.5052108e-08
    %v1014 = vsub.f32 %v1002, 2.5052108e-08
    %v1015 = vsub.f32 %v1003, 2.5052108e-08
    %v1016 = vsub.f32 %v1004, 2.5052108e-08
    %v1017 = vsub.f32 %v1005, 2.5052108e-08
    %v1018 = vsub.f32 %v1006, 2.5052108e-08
    %v1019 = vsub.f32 %v1007, 2.5052108e-08
    %v1020 = vsub.f32 %v1008, 2.5052108e-08
    %v1021 = vsub.f32 %v1009, 2.5052108e-08
    %v1022 = vsub.f32 %v1010, 2.5052108e-08
    %v1023 = vsub.f32 %v1011, 2.5052108e-08
    %v1024 = vmul.f32 %v1012, %v964
    %v1025 = vmul.f32 %v1013, %v965
    %v1026 = vmul.f32 %v1014, %v966
    %v1027 = vmul.f32 %v1015, %v967
    %v1028 = vmul.f32 %v1016, %v968
    %v1029 = vmul.f32 %v1017, %v969
    %v1030 = vmul.f32 %v1018, %v970
    %v1031 = vmul.f32 %v1019, %v971
    %v1032 = vmul.f32 %v1020, %v972
    %v1033 = vmul.f32 %v1021, %v973
    %v1034 = vmul.f32 %v1022, %v974
    %v1035 = vmul.f32 %v1023, %v975
    %v1036 = vadd.f32 %v1024, 2.7557319e-06
    %v1037 = vadd.f32 %v1025, 2.7557319e-06
    %v1038 = vadd.f32 %v1026, 2.7557319e-06
    %v1039 = vadd.f32 %v1027, 2.7557319e-06
    %v1040 = vadd.f32 %v1028, 2.7557319e-06
    %v1041 = vadd.f32 %v1029, 2.7557319e-06
    %v1042 = vadd.f32 %v1030, 2.7557319e-06
    %v1043 = vadd.f32 %v1031, 2.7557319e-06
    %v1044 = vadd.f32 %v1032, 2.7557319e-06
    %v1045 = vadd.f32 %v1033, 2.7557319e-06
    %v1046 = vadd.f32 %v1034, 2.7557319e-06
    %v1047 = vadd.f32 %v1035, 2.7557319e-06
    %v1048 = vmul.f32 %v1036, %v964
    %v1049 = vmul.f32 %v1037, %v965
    %v1050 = vmul.f32 %v1038, %v966
    %v1051 = vmul.f32 %v1039, %v967
    %v1052 = vmul.f32 %v1040, %v968
    %v1053 = vmul.f32 %v1041, %v969
    %v1054 = vmul.f32 %v1042, %v970
    %v1055 = vmul.f32 %v1043, %v971
    %v1056 = vmul.f32 %v1044, %v972
    %v1057 = vmul.f32 %v1045, %v973
    %v1058 = vmul.f32 %v1046, %v974
    %v1059 = vmul.f32 %v1047, %v975
    %v1060 = vsub.f32 %v1048, 0.0001984127
    %v1061 = vsub.f32 %v1049, 0.0001984127
    %v1062 = vsub.f32 %v1050, 0.0001984127
    %v1063 = vsub.f32 %v1051, 0.0001984127
    %v1064 = vsub.f32 %v1052, 0.0001984127
    %v1065 = vsub.f32 %v1053, 0.0001984127
    %v1066 = vsub.f32 %v1054, 0.0001984127
    %v1067 = vsub.f32 %v1055, 0.0001984127
    %v1068 = vsub.f32 %v1056, 0.0001984127
    %v1069 = vsub.f32 %v1057, 0.0001984127
    %v1070 = vsub.f32 %v1058, 0.0001984127
    %v1071 = vsub.f32 %v1059, 0.0001984127
    %v1072 = vmul.f32 %v1060, %v964
    %v1073 = vmul.f32 %v1061, %v965
    %v1074 = vmul.f32 %v1062, %v966
    %v1075 = vmul.f32 %v1063, %v967
    %v1076 = vmul.f32 %v1064, %v968
    %v1077 = vmul.f32 %v1065, %v969
    %v1078 = vmul.f32 %v1066, %v970
    %v1079 = vmul.f32 %v1067, %v971
    %v1080 = vmul.f32 %v1068, %v972
    %v1081 = vmul.f32 %v1069, %v973
    %v1082 = vmul.f32 %v1070, %v974
    %v1083 = vmul.f32 %v1071, %v975
    %v1084 = vadd.f32 %v1072, 0.008333334
    %v1085 = vadd.f32 %v1073, 0.008333334
    %v1086 = vadd.f32 %v1074, 0.008333334
    %v1087 = vadd.f32 %v1075, 0.008333334
    %v1088 = vadd.f32 %v1076, 0.008333334
    %v1089 = vadd.f32 %v1077, 0.008333334
    %v1090 = vadd.f32 %v1078, 0.008333334
    %v1091 = vadd.f32 %v1079, 0.008333334
    %v1092 = vadd.f32 %v1080, 0.008333334
    %v1093 = vadd.f32 %v1081, 0.008333334
    %v1094 = vadd.f32 %v1082, 0.008333334
    %v1095 = vadd.f32 %v1083, 0.008333334
    %v1096 = vmul.f32 %v1084, %v964
    %v1097 = vmul.f32 %v1085, %v965
    %v1098 = vmul.f32 %v1086, %v966
    %v1099 = vmul.f32 %v1087, %v967
    %v1100 = vmul.f32 %v1088, %v968
    %v1101 = vmul.f32 %v1089, %v969
    %v1102 = vmul.f32 %v1090, %v970
    %v1103 = vmul.f32 %v1091, %v971
    %v1104 = vmul.f32 %v1092, %v972
    %v1105 = vmul.f32 %v1093, %v973
    %v1106 = vmul.f32 %v1094, %v974
    %v1107 = vmul.f32 %v1095, %v975
    %v1108 = vsub.f32 %v1096, 0.16666667
    %v1109 = vsub.f32 %v1097, 0.16666667
    %v1110 = vsub.f32 %v1098, 0.16666667
    %v1111 = vsub.f32 %v1099, 0.16666667
    %v1112 = vsub.f32 %v1100, 0.16666667
    %v1113 = vsub.f32 %v1101, 0.16666667
    %v1114 = vsub.f32 %v1102, 0.16666667
    %v1115 = vsub.f32 %v1103, 0.16666667
    %v1116 = vsub.f32 %v1104, 0.16666667
    %v1117 = vsub.f32 %v1105, 0.16666667
    %v1118 = vsub.f32 %v1106, 0.16666667
    %v1119 = vsub.f32 %v1107, 0.16666667
    %v1120 = vmul.f32 %v964, %v1108
    %v1121 = vmul.f32 %v965, %v1109
    %v1122 = vmul.f32 %v966, %v1110
    %v1123 = vmul.f32 %v967, %v1111
    %v1124 = vmul.f32 %v968, %v1112
    %v1125 = vmul.f32 %v969, %v1113
    %v1126 = vmul.f32 %v970, %v1114
    %v1127 = vmul.f32 %v971, %v1115
    %v1128 = vmul.f32 %v972, %v1116
    %v1129 = vmul.f32 %v973, %v1117
    %v1130 = vmul.f32 %v974, %v1118
    %v1131 = vmul.f32 %v975, %v1119
    %v1132 = vadd.f32 %v1120, 1.0
    %v1133 = vadd.f32 %v1121, 1.0
    %v1134 = vadd.f32 %v1122, 1.0
    %v1135 = vadd.f32 %v1123, 1.0
    %v1136 = vadd.f32 %v1124, 1.0
    %v1137 = vadd.f32 %v1125, 1.0
    %v1138 = vadd.f32 %v1126, 1.0
    %v1139 = vadd.f32 %v1127, 1.0
    %v1140 = vadd.f32 %v1128, 1.0
    %v1141 = vadd.f32 %v1129, 1.0
    %v1142 = vadd.f32 %v1130, 1.0
    %v1143 = vadd.f32 %v1131, 1.0
    %v1144 = vmul.f32 %v952, %v1132
    %v1145 = vmul.f32 %v953, %v1133
    %v1146 = vmul.f32 %v954, %v1134
    %v1147 = vmul.f32 %v955, %v1135
    %v1148 = vmul.f32 %v956, %v1136
    %v1149 = vmul.f32 %v957, %v1137
    %v1150 = vmul.f32 %v958, %v1138
    %v1151 = vmul.f32 %v959, %v1139
    %v1152 = vmul.f32 %v960, %v1140
    %v1153 = vmul.f32 %v961, %v1141
    %v1154 = vmul.f32 %v962, %v1142
    %v1155 = vmul.f32 %v963, %v1143
    %v1156 = vld [vmem:[#allocation11] sm:$0xff]
    %v1157 = vld [vmem:[#allocation11 + $0x8] sm:$0xff]
    %v1158 = vld [vmem:[#allocation11 + $0x10] sm:$0xff]
    %v1159 = vld [vmem:[#allocation11 + $0x18] sm:$0xff]
    %v1160 = vld [vmem:[#allocation13] sm:$0xff]
    %v1161 = vld [vmem:[#allocation13 + $0x8] sm:$0xff]
    %v1162 = vld [vmem:[#allocation13 + $0x10] sm:$0xff]
    %v1163 = vld [vmem:[#allocation13 + $0x18] sm:$0xff]
    %1165 = vset.pattern.permute.xlu0 0
    %1166 = vperm.xlu0 %1165, %v1160
    %v1167 = vpop.permute.xlu0 %1166
    %1170 = vset.pattern.permute.xlu0 0
    %1171 = vperm.xlu0 %1170, %v1161
    %v1172 = vpop.permute.xlu0 %1171
    %1175 = vset.pattern.permute.xlu0 0
    %1176 = vperm.xlu0 %1175, %v1162
    %v1177 = vpop.permute.xlu0 %1176
    %1180 = vset.pattern.permute.xlu0 0
    %1181 = vperm.xlu0 %1180, %v1163
    %v1182 = vpop.permute.xlu0 %1181
    %v1185 = vsel %vm693, %v1156, 0
    %v1188 = vsel %vm693, %v1157, 0
    %v1191 = vsel %vm693, %v1158, 0
    %v1194 = vsel %vm693, %v1159, 0
    %1196 = vmatprep.subr.mxu0 %v1145
    %1197 = vmatpush1.msra.mxu0 %v1144
    %1198 = vmatprep.subr.mxu0 %v1148
    %1199 = vmatpush1.msra.mxu0 %v1147
    %1200 = vmatprep.subr.mxu0 %v1151
    %1201 = vmatpush1.msra.mxu0 %v1150
    %1202 = vmatprep.subr.mxu0 %v1154
    %1203 = vmatpush1.msra.mxu0 %v1153
    %1204 = vmatprep.subr.mxu0 0.0
    %1205 = vmatpush1.msra.mxu0 0.0
    %1206 = vmatprep.subr.mxu0 0.0
    %1207 = vmatpush1.msra.mxu0 0.0
    %1208 = vmatprep.subr.mxu0 0.0
    %1209 = vmatpush1.msra.mxu0 0.0
    %1210 = vmatprep.subr.mxu0 0.0
    %1211 = vmatpush1.msra.mxu0 0.0
    %1212 = vmatprep.subr.mxu0 0.0
    %1213 = vmatpush1.msra.mxu0 0.0
    %1214 = vmatprep.subr.mxu0 0.0
    %1215 = vmatpush1.msra.mxu0 0.0
    %1216 = vmatprep.subr.mxu0 0.0
    %1217 = vmatpush1.msra.mxu0 0.0
    %1218 = vmatprep.subr.mxu0 0.0
    %1219 = vmatpush1.msra.mxu0 0.0
    %1220 = vmatprep.subr.mxu0 0.0
    %1221 = vmatpush1.msra.mxu0 0.0
    %1222 = vmatprep.subr.mxu0 0.0
    %1223 = vmatpush1.msra.mxu0 0.0
    %1224 = vmatprep.subr.mxu0 0.0
    %1225 = vmatpush1.msra.mxu0 0.0
    %1226 = vmatprep.subr.mxu0 0.0
    %1227 = vmatpush1.msra.mxu0 0.0
    %1228 = vmatprep.subr.mxu0 0.0
    %1229 = vmatpush1.msra.mxu0 0.0
    %1230 = vmatprep.subr.mxu0 0.0
    %1231 = vmatpush1.msra.mxu0 0.0
    %1232 = vmatprep.subr.mxu0 0.0
    %1233 = vmatpush1.msra.mxu0 0.0
    %1234 = vmatprep.subr.mxu0 0.0
    %1235 = vmatpush1.msra.mxu0 0.0
    %1236 = vmatprep.subr.mxu0 0.0
    %1237 = vmatpush1.msra.mxu0 0.0
    %1238 = vmatprep.subr.mxu0 0.0
    %1239 = vmatpush1.msra.mxu0 0.0
    %1240 = vmatprep.subr.mxu0 0.0
    %1241 = vmatpush1.msra.mxu0 0.0
    %1242 = vmatprep.subr.mxu0 0.0
    %1243 = vmatpush1.msra.mxu0 0.0
    %1244 = vmatprep.subr.mxu0 0.0
    %1245 = vmatpush1.msra.mxu0 0.0
    %1246 = vmatprep.subr.mxu0 0.0
    %1247 = vmatpush1.msra.mxu0 0.0
    %1248 = vmatprep.subr.mxu0 0.0
    %1249 = vmatpush1.msra.mxu0 0.0
    %1250 = vmatprep.subr.mxu0 0.0
    %1251 = vmatpush1.msra.mxu0 0.0
    %1252 = vmatprep.subr.mxu0 0.0
    %1253 = vmatpush1.msra.mxu0 0.0
    %1254 = vmatprep.subr.mxu0 0.0
    %1255 = vmatpush1.msra.mxu0 0.0
    %1256 = vmatprep.subr.mxu0 0.0
    %1257 = vmatpush1.msra.mxu0 0.0
    %1258 = vmatprep.subr.mxu0 0.0
    %1259 = vmatpush1.msra.mxu0 0.0
    %1260 = vmatprep.mubr.f32.mxu0 0.0
    %1261 = vmatmul.mubr.f32.gmra.mrb[0].mxu0 %v1185
    %v1262 = vpop.f32.mrb[0].mxu0
    %v1263 = vadd.f32 %v1167, %v1262
    %v1264 = vpop.f32.mrb[0].mxu0
    %v1265 = vadd.f32 %v1167, %v1264
    %1266 = vmatprep.mubr.f32.mxu0 0.0
    %1267 = vmatmul.mubr.f32.gmra.mrb[0].mxu0 %v1188
    %v1268 = vpop.f32.mrb[0].mxu0
    %v1269 = vadd.f32 %v1172, %v1268
    %v1270 = vpop.f32.mrb[0].mxu0
    %v1271 = vadd.f32 %v1172, %v1270
    %1272 = vmatprep.mubr.f32.mxu0 0.0
    %1273 = vmatmul.mubr.f32.gmra.mrb[0].mxu0 %v1191
    %v1274 = vpop.f32.mrb[0].mxu0
    %v1275 = vadd.f32 %v1177, %v1274
    %v1276 = vpop.f32.mrb[0].mxu0
    %v1277 = vadd.f32 %v1177, %v1276
    %1278 = vmatprep.mubr.f32.mxu0 0.0
    %1279 = vmatmul.mubr.f32.gmra.mrb[0].mxu0 %v1194
    %v1280 = vpop.f32.mrb[0].mxu0
    %v1281 = vadd.f32 %v1182, %v1280
    %v1282 = vpop.f32.mrb[0].mxu0
    %v1283 = vadd.f32 %v1182, %v1282
    %1284 = vdwg.mxu0
    %1285 = vmatprep.subr.mxu0 0.0
    %1286 = vmatpush1.msra.mxu0 %v1146
    %1287 = vmatprep.subr.mxu0 0.0
    %1288 = vmatpush1.msra.mxu0 %v1149
    %1289 = vmatprep.subr.mxu0 0.0
    %1290 = vmatpush1.msra.mxu0 %v1152
    %1291 = vmatprep.subr.mxu0 0.0
    %1292 = vmatpush1.msra.mxu0 %v1155
    %1293 = vmatprep.subr.mxu0 0.0
    %1294 = vmatpush1.msra.mxu0 0.0
    %1295 = vmatprep.subr.mxu0 0.0
    %1296 = vmatpush1.msra.mxu0 0.0
    %1297 = vmatprep.subr.mxu0 0.0
    %1298 = vmatpush1.msra.mxu0 0.0
    %1299 = vmatprep.subr.mxu0 0.0
    %1300 = vmatpush1.msra.mxu0 0.0
    %1301 = vmatprep.subr.mxu0 0.0
    %1302 = vmatpush1.msra.mxu0 0.0
    %1303 = vmatprep.subr.mxu0 0.0
    %1304 = vmatpush1.msra.mxu0 0.0
    %1305 = vmatprep.subr.mxu0 0.0
    %1306 = vmatpush1.msra.mxu0 0.0
    %1307 = vmatprep.subr.mxu0 0.0
    %1308 = vmatpush1.msra.mxu0 0.0
    %1309 = vmatprep.subr.mxu0 0.0
    %1310 = vmatpush1.msra.mxu0 0.0
    %1311 = vmatprep.subr.mxu0 0.0
    %1312 = vmatpush1.msra.mxu0 0.0
    %1313 = vmatprep.subr.mxu0 0.0
    %1314 = vmatpush1.msra.mxu0 0.0
    %1315 = vmatprep.subr.mxu0 0.0
    %1316 = vmatpush1.msra.mxu0 0.0
    %1317 = vmatprep.subr.mxu0 0.0
    %1318 = vmatpush1.msra.mxu0 0.0
    %1319 = vmatprep.subr.mxu0 0.0
    %1320 = vmatpush1.msra.mxu0 0.0
    %1321 = vmatprep.subr.mxu0 0.0
    %1322 = vmatpush1.msra.mxu0 0.0
    %1323 = vmatprep.subr.mxu0 0.0
    %1324 = vmatpush1.msra.mxu0 0.0
    %1325 = vmatprep.subr.mxu0 0.0
    %1326 = vmatpush1.msra.mxu0 0.0
    %1327 = vmatprep.subr.mxu0 0.0
    %1328 = vmatpush1.msra.mxu0 0.0
    %1329 = vmatprep.subr.mxu0 0.0
    %1330 = vmatpush1.msra.mxu0 0.0
    %1331 = vmatprep.subr.mxu0 0.0
    %1332 = vmatpush1.msra.mxu0 0.0
    %1333 = vmatprep.subr.mxu0 0.0
    %1334 = vmatpush1.msra.mxu0 0.0
    %1335 = vmatprep.subr.mxu0 0.0
    %1336 = vmatpush1.msra.mxu0 0.0
    %1337 = vmatprep.subr.mxu0 0.0
    %1338 = vmatpush1.msra.mxu0 0.0
    %1339 = vmatprep.subr.mxu0 0.0
    %1340 = vmatpush1.msra.mxu0 0.0
    %1341 = vmatprep.subr.mxu0 0.0
    %1342 = vmatpush1.msra.mxu0 0.0
    %1343 = vmatprep.subr.mxu0 0.0
    %1344 = vmatpush1.msra.mxu0 0.0
    %1345 = vmatprep.subr.mxu0 0.0
    %1346 = vmatpush1.msra.mxu0 0.0
    %1347 = vmatprep.subr.mxu0 0.0
    %1348 = vmatpush1.msra.mxu0 0.0
    %1349 = vmatprep.mubr.f32.mxu0 0.0
    %1350 = vmatmul.mubr.f32.gmra.mrb[0].mxu0 %v1185
    %v1351 = vpop.f32.mrb[0].mxu0
    %v1352 = vadd.f32 %v1167, %v1351
    %v1353 = vpop.f32.mrb[0].mxu0
    %1354 = vmatprep.mubr.f32.mxu0 0.0
    %1355 = vmatmul.mubr.f32.gmra.mrb[0].mxu0 %v1188
    %v1356 = vpop.f32.mrb[0].mxu0
    %v1357 = vadd.f32 %v1172, %v1356
    %v1358 = vpop.f32.mrb[0].mxu0
    %1359 = vmatprep.mubr.f32.mxu0 0.0
    %1360 = vmatmul.mubr.f32.gmra.mrb[0].mxu0 %v1191
    %v1361 = vpop.f32.mrb[0].mxu0
    %v1362 = vadd.f32 %v1177, %v1361
    %v1363 = vpop.f32.mrb[0].mxu0
    %1364 = vmatprep.mubr.f32.mxu0 0.0
    %1365 = vmatmul.mubr.f32.gmra.mrb[0].mxu0 %v1194
    %v1366 = vpop.f32.mrb[0].mxu0
    %v1367 = vadd.f32 %v1182, %v1366
    %v1368 = vpop.f32.mrb[0].mxu0
    %1369 = vdwg.mxu0
    %v1370 = vmul.f32 %v1263, 0.15915494
    %v1371 = vmul.f32 %v1265, 0.15915494
    %v1372 = vmul.f32 %v1352, 0.15915494
    %v1373 = vmul.f32 %v1269, 0.15915494
    %v1374 = vmul.f32 %v1271, 0.15915494
    %v1375 = vmul.f32 %v1357, 0.15915494
    %v1376 = vmul.f32 %v1275, 0.15915494
    %v1377 = vmul.f32 %v1277, 0.15915494
    %v1378 = vmul.f32 %v1362, 0.15915494
    %v1379 = vmul.f32 %v1281, 0.15915494
    %v1380 = vmul.f32 %v1283, 0.15915494
    %v1381 = vmul.f32 %v1367, 0.15915494
    %v1382 = vadd.f32 %v1370, 0.5
    %v1383 = vadd.f32 %v1371, 0.5
    %v1384 = vadd.f32 %v1372, 0.5
    %v1385 = vadd.f32 %v1373, 0.5
    %v1386 = vadd.f32 %v1374, 0.5
    %v1387 = vadd.f32 %v1375, 0.5
    %v1388 = vadd.f32 %v1376, 0.5
    %v1389 = vadd.f32 %v1377, 0.5
    %v1390 = vadd.f32 %v1378, 0.5
    %v1391 = vadd.f32 %v1379, 0.5
    %v1392 = vadd.f32 %v1380, 0.5
    %v1393 = vadd.f32 %v1381, 0.5
    %v1394 = vfloor.f32 %v1382
    %v1395 = vfloor.f32 %v1383
    %v1396 = vfloor.f32 %v1384
    %v1397 = vfloor.f32 %v1385
    %v1398 = vfloor.f32 %v1386
    %v1399 = vfloor.f32 %v1387
    %v1400 = vfloor.f32 %v1388
    %v1401 = vfloor.f32 %v1389
    %v1402 = vfloor.f32 %v1390
    %v1403 = vfloor.f32 %v1391
    %v1404 = vfloor.f32 %v1392
    %v1405 = vfloor.f32 %v1393
    %v1406 = vmul.f32 %v1394, 6.28125
    %v1407 = vmul.f32 %v1395, 6.28125
    %v1408 = vmul.f32 %v1396, 6.28125
    %v1409 = vmul.f32 %v1397, 6.28125
    %v1410 = vmul.f32 %v1398, 6.28125
    %v1411 = vmul.f32 %v1399, 6.28125
    %v1412 = vmul.f32 %v1400, 6.28125
    %v1413 = vmul.f32 %v1401, 6.28125
    %v1414 = vmul.f32 %v1402, 6.28125
    %v1415 = vmul.f32 %v1403, 6.28125
    %v1416 = vmul.f32 %v1404, 6.28125
    %v1417 = vmul.f32 %v1405, 6.28125
    %v1418 = vsub.f32 %v1263, %v1406
    %v1419 = vsub.f32 %v1265, %v1407
    %v1420 = vsub.f32 %v1352, %v1408
    %v1421 = vsub.f32 %v1269, %v1409
    %v1422 = vsub.f32 %v1271, %v1410
    %v1423 = vsub.f32 %v1357, %v1411
    %v1424 = vsub.f32 %v1275, %v1412
    %v1425 = vsub.f32 %v1277, %v1413
    %v1426 = vsub.f32 %v1362, %v1414
    %v1427 = vsub.f32 %v1281, %v1415
    %v1428 = vsub.f32 %v1283, %v1416
    %v1429 = vsub.f32 %v1367, %v1417
    %v1430 = vmul.f32 %v1394, 0.0019353072
    %v1431 = vmul.f32 %v1395, 0.0019353072
    %v1432 = vmul.f32 %v1396, 0.0019353072
    %v1433 = vmul.f32 %v1397, 0.0019353072
    %v1434 = vmul.f32 %v1398, 0.0019353072
    %v1435 = vmul.f32 %v1399, 0.0019353072
    %v1436 = vmul.f32 %v1400, 0.0019353072
    %v1437 = vmul.f32 %v1401, 0.0019353072
    %v1438 = vmul.f32 %v1402, 0.0019353072
    %v1439 = vmul.f32 %v1403, 0.0019353072
    %v1440 = vmul.f32 %v1404, 0.0019353072
    %v1441 = vmul.f32 %v1405, 0.0019353072
    %v1442 = vsub.f32 %v1418, %v1430
    %v1443 = vsub.f32 %v1419, %v1431
    %v1444 = vsub.f32 %v1420, %v1432
    %v1445 = vsub.f32 %v1421, %v1433
    %v1446 = vsub.f32 %v1422, %v1434
    %v1447 = vsub.f32 %v1423, %v1435
    %v1448 = vsub.f32 %v1424, %v1436
    %v1449 = vsub.f32 %v1425, %v1437
    %v1450 = vsub.f32 %v1426, %v1438
    %v1451 = vsub.f32 %v1427, %v1439
    %v1452 = vsub.f32 %v1428, %v1440
    %v1453 = vsub.f32 %v1429, %v1441
    %v1454 = vmul.f32 %v1442, %v1442
    %v1455 = vmul.f32 %v1443, %v1443
    %v1456 = vmul.f32 %v1444, %v1444
    %v1457 = vmul.f32 %v1445, %v1445
    %v1458 = vmul.f32 %v1446, %v1446
    %v1459 = vmul.f32 %v1447, %v1447
    %v1460 = vmul.f32 %v1448, %v1448
    %v1461 = vmul.f32 %v1449, %v1449
    %v1462 = vmul.f32 %v1450, %v1450
    %v1463 = vmul.f32 %v1451, %v1451
    %v1464 = vmul.f32 %v1452, %v1452
    %v1465 = vmul.f32 %v1453, %v1453
    %v1466 = vmul.f32 %v1454, -7.6471636e-13
    %v1467 = vmul.f32 %v1455, -7.6471636e-13
    %v1468 = vmul.f32 %v1456, -7.6471636e-13
    %v1469 = vmul.f32 %v1457, -7.6471636e-13
    %v1470 = vmul.f32 %v1458, -7.6471636e-13
    %v1471 = vmul.f32 %v1459, -7.6471636e-13
    %v1472 = vmul.f32 %v1460, -7.6471636e-13
    %v1473 = vmul.f32 %v1461, -7.6471636e-13
    %v1474 = vmul.f32 %v1462, -7.6471636e-13
    %v1475 = vmul.f32 %v1463, -7.6471636e-13
    %v1476 = vmul.f32 %v1464, -7.6471636e-13
    %v1477 = vmul.f32 %v1465, -7.6471636e-13
    %v1478 = vadd.f32 %v1466, 1.6059044e-10
    %v1479 = vadd.f32 %v1467, 1.6059044e-10
    %v1480 = vadd.f32 %v1468, 1.6059044e-10
    %v1481 = vadd.f32 %v1469, 1.6059044e-10
    %v1482 = vadd.f32 %v1470, 1.6059044e-10
    %v1483 = vadd.f32 %v1471, 1.6059044e-10
    %v1484 = vadd.f32 %v1472, 1.6059044e-10
    %v1485 = vadd.f32 %v1473, 1.6059044e-10
    %v1486 = vadd.f32 %v1474, 1.6059044e-10
    %v1487 = vadd.f32 %v1475, 1.6059044e-10
    %v1488 = vadd.f32 %v1476, 1.6059044e-10
    %v1489 = vadd.f32 %v1477, 1.6059044e-10
    %v1490 = vmul.f32 %v1478, %v1454
    %v1491 = vmul.f32 %v1479, %v1455
    %v1492 = vmul.f32 %v1480, %v1456
    %v1493 = vmul.f32 %v1481, %v1457
    %v1494 = vmul.f32 %v1482, %v1458
    %v1495 = vmul.f32 %v1483, %v1459
    %v1496 = vmul.f32 %v1484, %v1460
    %v1497 = vmul.f32 %v1485, %v1461
    %v1498 = vmul.f32 %v1486, %v1462
    %v1499 = vmul.f32 %v1487, %v1463
    %v1500 = vmul.f32 %v1488, %v1464
    %v1501 = vmul.f32 %v1489, %v1465
    %v1502 = vsub.f32 %v1490, 2.5052108e-08
    %v1503 = vsub.f32 %v1491, 2.5052108e-08
    %v1504 = vsub.f32 %v1492, 2.5052108e-08
    %v1505 = vsub.f32 %v1493, 2.5052108e-08
    %v1506 = vsub.f32 %v1494, 2.5052108e-08
    %v1507 = vsub.f32 %v1495, 2.5052108e-08
    %v1508 = vsub.f32 %v1496, 2.5052108e-08
    %v1509 = vsub.f32 %v1497, 2.5052108e-08
    %v1510 = vsub.f32 %v1498, 2.5052108e-08
    %v1511 = vsub.f32 %v1499, 2.5052108e-08
    %v1512 = vsub.f32 %v1500, 2.5052108e-08
    %v1513 = vsub.f32 %v1501, 2.5052108e-08
    %v1514 = vmul.f32 %v1502, %v1454
    %v1515 = vmul.f32 %v1503, %v1455
    %v1516 = vmul.f32 %v1504, %v1456
    %v1517 = vmul.f32 %v1505, %v1457
    %v1518 = vmul.f32 %v1506, %v1458
    %v1519 = vmul.f32 %v1507, %v1459
    %v1520 = vmul.f32 %v1508, %v1460
    %v1521 = vmul.f32 %v1509, %v1461
    %v1522 = vmul.f32 %v1510, %v1462
    %v1523 = vmul.f32 %v1511, %v1463
    %v1524 = vmul.f32 %v1512, %v1464
    %v1525 = vmul.f32 %v1513, %v1465
    %v1526 = vadd.f32 %v1514, 2.7557319e-06
    %v1527 = vadd.f32 %v1515, 2.7557319e-06
    %v1528 = vadd.f32 %v1516, 2.7557319e-06
    %v1529 = vadd.f32 %v1517, 2.7557319e-06
    %v1530 = vadd.f32 %v1518, 2.7557319e-06
    %v1531 = vadd.f32 %v1519, 2.7557319e-06
    %v1532 = vadd.f32 %v1520, 2.7557319e-06
    %v1533 = vadd.f32 %v1521, 2.7557319e-06
    %v1534 = vadd.f32 %v1522, 2.7557319e-06
    %v1535 = vadd.f32 %v1523, 2.7557319e-06
    %v1536 = vadd.f32 %v1524, 2.7557319e-06
    %v1537 = vadd.f32 %v1525, 2.7557319e-06
    %v1538 = vmul.f32 %v1526, %v1454
    %v1539 = vmul.f32 %v1527, %v1455
    %v1540 = vmul.f32 %v1528, %v1456
    %v1541 = vmul.f32 %v1529, %v1457
    %v1542 = vmul.f32 %v1530, %v1458
    %v1543 = vmul.f32 %v1531, %v1459
    %v1544 = vmul.f32 %v1532, %v1460
    %v1545 = vmul.f32 %v1533, %v1461
    %v1546 = vmul.f32 %v1534, %v1462
    %v1547 = vmul.f32 %v1535, %v1463
    %v1548 = vmul.f32 %v1536, %v1464
    %v1549 = vmul.f32 %v1537, %v1465
    %v1550 = vsub.f32 %v1538, 0.0001984127
    %v1551 = vsub.f32 %v1539, 0.0001984127
    %v1552 = vsub.f32 %v1540, 0.0001984127
    %v1553 = vsub.f32 %v1541, 0.0001984127
    %v1554 = vsub.f32 %v1542, 0.0001984127
    %v1555 = vsub.f32 %v1543, 0.0001984127
    %v1556 = vsub.f32 %v1544, 0.0001984127
    %v1557 = vsub.f32 %v1545, 0.0001984127
    %v1558 = vsub.f32 %v1546, 0.0001984127
    %v1559 = vsub.f32 %v1547, 0.0001984127
    %v1560 = vsub.f32 %v1548, 0.0001984127
    %v1561 = vsub.f32 %v1549, 0.0001984127
    %v1562 = vmul.f32 %v1550, %v1454
    %v1563 = vmul.f32 %v1551, %v1455
    %v1564 = vmul.f32 %v1552, %v1456
    %v1565 = vmul.f32 %v1553, %v1457
    %v1566 = vmul.f32 %v1554, %v1458
    %v1567 = vmul.f32 %v1555, %v1459
    %v1568 = vmul.f32 %v1556, %v1460
    %v1569 = vmul.f32 %v1557, %v1461
    %v1570 = vmul.f32 %v1558, %v1462
    %v1571 = vmul.f32 %v1559, %v1463
    %v1572 = vmul.f32 %v1560, %v1464
    %v1573 = vmul.f32 %v1561, %v1465
    %v1574 = vadd.f32 %v1562, 0.008333334
    %v1575 = vadd.f32 %v1563, 0.008333334
    %v1576 = vadd.f32 %v1564, 0.008333334
    %v1577 = vadd.f32 %v1565, 0.008333334
    %v1578 = vadd.f32 %v1566, 0.008333334
    %v1579 = vadd.f32 %v1567, 0.008333334
    %v1580 = vadd.f32 %v1568, 0.008333334
    %v1581 = vadd.f32 %v1569, 0.008333334
    %v1582 = vadd.f32 %v1570, 0.008333334
    %v1583 = vadd.f32 %v1571, 0.008333334
    %v1584 = vadd.f32 %v1572, 0.008333334
    %v1585 = vadd.f32 %v1573, 0.008333334
    %v1586 = vmul.f32 %v1574, %v1454
    %v1587 = vmul.f32 %v1575, %v1455
    %v1588 = vmul.f32 %v1576, %v1456
    %v1589 = vmul.f32 %v1577, %v1457
    %v1590 = vmul.f32 %v1578, %v1458
    %v1591 = vmul.f32 %v1579, %v1459
    %v1592 = vmul.f32 %v1580, %v1460
    %v1593 = vmul.f32 %v1581, %v1461
    %v1594 = vmul.f32 %v1582, %v1462
    %v1595 = vmul.f32 %v1583, %v1463
    %v1596 = vmul.f32 %v1584, %v1464
    %v1597 = vmul.f32 %v1585, %v1465
    %v1598 = vsub.f32 %v1586, 0.16666667
    %v1599 = vsub.f32 %v1587, 0.16666667
    %v1600 = vsub.f32 %v1588, 0.16666667
    %v1601 = vsub.f32 %v1589, 0.16666667
    %v1602 = vsub.f32 %v1590, 0.16666667
    %v1603 = vsub.f32 %v1591, 0.16666667
    %v1604 = vsub.f32 %v1592, 0.16666667
    %v1605 = vsub.f32 %v1593, 0.16666667
    %v1606 = vsub.f32 %v1594, 0.16666667
    %v1607 = vsub.f32 %v1595, 0.16666667
    %v1608 = vsub.f32 %v1596, 0.16666667
    %v1609 = vsub.f32 %v1597, 0.16666667
    %v1610 = vmul.f32 %v1454, %v1598
    %v1611 = vmul.f32 %v1455, %v1599
    %v1612 = vmul.f32 %v1456, %v1600
    %v1613 = vmul.f32 %v1457, %v1601
    %v1614 = vmul.f32 %v1458, %v1602
    %v1615 = vmul.f32 %v1459, %v1603
    %v1616 = vmul.f32 %v1460, %v1604
    %v1617 = vmul.f32 %v1461, %v1605
    %v1618 = vmul.f32 %v1462, %v1606
    %v1619 = vmul.f32 %v1463, %v1607
    %v1620 = vmul.f32 %v1464, %v1608
    %v1621 = vmul.f32 %v1465, %v1609
    %v1622 = vadd.f32 %v1610, 1.0
    %v1623 = vadd.f32 %v1611, 1.0
    %v1624 = vadd.f32 %v1612, 1.0
    %v1625 = vadd.f32 %v1613, 1.0
    %v1626 = vadd.f32 %v1614, 1.0
    %v1627 = vadd.f32 %v1615, 1.0
    %v1628 = vadd.f32 %v1616, 1.0
    %v1629 = vadd.f32 %v1617, 1.0
    %v1630 = vadd.f32 %v1618, 1.0
    %v1631 = vadd.f32 %v1619, 1.0
    %v1632 = vadd.f32 %v1620, 1.0
    %v1633 = vadd.f32 %v1621, 1.0
    %v1634 = vmul.f32 %v1442, %v1622
    %v1635 = vmul.f32 %v1443, %v1623
    %v1636 = vmul.f32 %v1444, %v1624
    %v1637 = vmul.f32 %v1445, %v1625
    %v1638 = vmul.f32 %v1446, %v1626
    %v1639 = vmul.f32 %v1447, %v1627
    %v1640 = vmul.f32 %v1448, %v1628
    %v1641 = vmul.f32 %v1449, %v1629
    %v1642 = vmul.f32 %v1450, %v1630
    %v1643 = vmul.f32 %v1451, %v1631
    %v1644 = vmul.f32 %v1452, %v1632
    %v1645 = vmul.f32 %v1453, %v1633
    %v1646 = vld [vmem:[#allocation14] sm:$0x7]
    %v1647 = vld [vmem:[#allocation16] sm:$0x7]
    %1649 = vset.pattern.permute.xlu0 0
    %1650 = vperm.xlu0 %1649, %v1647
    %v1651 = vpop.permute.xlu0 %1650
    %v1654 = vsel %vm693, %v1646, 0
    %1656 = vmatprep.subr.mxu0 %v1635
    %1657 = vmatpush1.msra.mxu0 %v1634
    %1658 = vmatprep.subr.mxu0 %v1638
    %1659 = vmatpush1.msra.mxu0 %v1637
    %1660 = vmatprep.subr.mxu0 %v1641
    %1661 = vmatpush1.msra.mxu0 %v1640
    %1662 = vmatprep.subr.mxu0 %v1644
    %1663 = vmatpush1.msra.mxu0 %v1643
    %1664 = vmatprep.subr.mxu0 0.0
    %1665 = vmatpush1.msra.mxu0 0.0
    %1666 = vmatprep.subr.mxu0 0.0
    %1667 = vmatpush1.msra.mxu0 0.0
    %1668 = vmatprep.subr.mxu0 0.0
    %1669 = vmatpush1.msra.mxu0 0.0
    %1670 = vmatprep.subr.mxu0 0.0
    %1671 = vmatpush1.msra.mxu0 0.0
    %1672 = vmatprep.subr.mxu0 0.0
    %1673 = vmatpush1.msra.mxu0 0.0
    %1674 = vmatprep.subr.mxu0 0.0
    %1675 = vmatpush1.msra.mxu0 0.0
    %1676 = vmatprep.subr.mxu0 0.0
    %1677 = vmatpush1.msra.mxu0 0.0
    %1678 = vmatprep.subr.mxu0 0.0
    %1679 = vmatpush1.msra.mxu0 0.0
    %1680 = vmatprep.subr.mxu0 0.0
    %1681 = vmatpush1.msra.mxu0 0.0
    %1682 = vmatprep.subr.mxu0 0.0
    %1683 = vmatpush1.msra.mxu0 0.0
    %1684 = vmatprep.subr.mxu0 0.0
    %1685 = vmatpush1.msra.mxu0 0.0
    %1686 = vmatprep.subr.mxu0 0.0
    %1687 = vmatpush1.msra.mxu0 0.0
    %1688 = vmatprep.subr.mxu0 0.0
    %1689 = vmatpush1.msra.mxu0 0.0
    %1690 = vmatprep.subr.mxu0 0.0
    %1691 = vmatpush1.msra.mxu0 0.0
    %1692 = vmatprep.subr.mxu0 0.0
    %1693 = vmatpush1.msra.mxu0 0.0
    %1694 = vmatprep.subr.mxu0 0.0
    %1695 = vmatpush1.msra.mxu0 0.0
    %1696 = vmatprep.subr.mxu0 0.0
    %1697 = vmatpush1.msra.mxu0 0.0
    %1698 = vmatprep.subr.mxu0 0.0
    %1699 = vmatpush1.msra.mxu0 0.0
    %1700 = vmatprep.subr.mxu0 0.0
    %1701 = vmatpush1.msra.mxu0 0.0
    %1702 = vmatprep.subr.mxu0 0.0
    %1703 = vmatpush1.msra.mxu0 0.0
    %1704 = vmatprep.subr.mxu0 0.0
    %1705 = vmatpush1.msra.mxu0 0.0
    %1706 = vmatprep.subr.mxu0 0.0
    %1707 = vmatpush1.msra.mxu0 0.0
    %1708 = vmatprep.subr.mxu0 0.0
    %1709 = vmatpush1.msra.mxu0 0.0
    %1710 = vmatprep.subr.mxu0 0.0
    %1711 = vmatpush1.msra.mxu0 0.0
    %1712 = vmatprep.subr.mxu0 0.0
    %1713 = vmatpush1.msra.mxu0 0.0
    %1714 = vmatprep.subr.mxu0 0.0
    %1715 = vmatpush1.msra.mxu0 0.0
    %1716 = vmatprep.subr.mxu0 0.0
    %1717 = vmatpush1.msra.mxu0 0.0
    %1718 = vmatprep.subr.mxu0 0.0
    %1719 = vmatpush1.msra.mxu0 0.0
    %1720 = vmatprep.mubr.f32.mxu0 0.0
    %1721 = vmatmul.mubr.f32.gmra.mrb[0].mxu0 %v1654
    %v1722 = vpop.f32.mrb[0].mxu0
    %v1723 = vadd.f32 %v1651, %v1722
    %v1724 = vpop.f32.mrb[0].mxu0
    %v1725 = vadd.f32 %v1651, %v1724
    %1726 = vdwg.mxu0
    %1727 = vmatprep.subr.mxu0 0.0
    %1728 = vmatpush1.msra.mxu0 %v1636
    %1729 = vmatprep.subr.mxu0 0.0
    %1730 = vmatpush1.msra.mxu0 %v1639
    %1731 = vmatprep.subr.mxu0 0.0
    %1732 = vmatpush1.msra.mxu0 %v1642
    %1733 = vmatprep.subr.mxu0 0.0
    %1734 = vmatpush1.msra.mxu0 %v1645
    %1735 = vmatprep.subr.mxu0 0.0
    %1736 = vmatpush1.msra.mxu0 0.0
    %1737 = vmatprep.subr.mxu0 0.0
    %1738 = vmatpush1.msra.mxu0 0.0
    %1739 = vmatprep.subr.mxu0 0.0
    %1740 = vmatpush1.msra.mxu0 0.0
    %1741 = vmatprep.subr.mxu0 0.0
    %1742 = vmatpush1.msra.mxu0 0.0
    %1743 = vmatprep.subr.mxu0 0.0
    %1744 = vmatpush1.msra.mxu0 0.0
    %1745 = vmatprep.subr.mxu0 0.0
    %1746 = vmatpush1.msra.mxu0 0.0
    %1747 = vmatprep.subr.mxu0 0.0
    %1748 = vmatpush1.msra.mxu0 0.0
    %1749 = vmatprep.subr.mxu0 0.0
    %1750 = vmatpush1.msra.mxu0 0.0
    %1751 = vmatprep.subr.mxu0 0.0
    %1752 = vmatpush1.msra.mxu0 0.0
    %1753 = vmatprep.subr.mxu0 0.0
    %1754 = vmatpush1.msra.mxu0 0.0
    %1755 = vmatprep.subr.mxu0 0.0
    %1756 = vmatpush1.msra.mxu0 0.0
    %1757 = vmatprep.subr.mxu0 0.0
    %1758 = vmatpush1.msra.mxu0 0.0
    %1759 = vmatprep.subr.mxu0 0.0
    %1760 = vmatpush1.msra.mxu0 0.0
    %1761 = vmatprep.subr.mxu0 0.0
    %1762 = vmatpush1.msra.mxu0 0.0
    %1763 = vmatprep.subr.mxu0 0.0
    %1764 = vmatpush1.msra.mxu0 0.0
    %1765 = vmatprep.subr.mxu0 0.0
    %1766 = vmatpush1.msra.mxu0 0.0
    %1767 = vmatprep.subr.mxu0 0.0
    %1768 = vmatpush1.msra.mxu0 0.0
    %1769 = vmatprep.subr.mxu0 0.0
    %1770 = vmatpush1.msra.mxu0 0.0
    %1771 = vmatprep.subr.mxu0 0.0
    %1772 = vmatpush1.msra.mxu0 0.0
    %1773 = vmatprep.subr.mxu0 0.0
    %1774 = vmatpush1.msra.mxu0 0.0
    %1775 = vmatprep.subr.mxu0 0.0
    %1776 = vmatpush1.msra.mxu0 0.0
    %1777 = vmatprep.subr.mxu0 0.0
    %1778 = vmatpush1.msra.mxu0 0.0
    %1779 = vmatprep.subr.mxu0 0.0
    %1780 = vmatpush1.msra.mxu0 0.0
    %1781 = vmatprep.subr.mxu0 0.0
    %1782 = vmatpush1.msra.mxu0 0.0
    %1783 = vmatprep.subr.mxu0 0.0
    %1784 = vmatpush1.msra.mxu0 0.0
    %1785 = vmatprep.subr.mxu0 0.0
    %1786 = vmatpush1.msra.mxu0 0.0
    %1787 = vmatprep.subr.mxu0 0.0
    %1788 = vmatpush1.msra.mxu0 0.0
    %1789 = vmatprep.subr.mxu0 0.0
    %1790 = vmatpush1.msra.mxu0 0.0
    %1791 = vmatprep.mubr.f32.mxu0 0.0
    %1792 = vmatmul.mubr.f32.gmra.mrb[0].mxu0 %v1654
    %v1793 = vpop.f32.mrb[0].mxu0
    %v1794 = vadd.f32 %v1651, %v1793
    %v1795 = vpop.f32.mrb[0].mxu0
    %1796 = vdwg.mxu0
    %v1799 = vcombine.low %v1723, %v1725
    %1801 = vst [vmem:[#allocation17] sm:$0x77] %v1799
    %1802 = vst [vmem:[#allocation17 + $0x8] sm:$0x7] %v1794
    // Predicated region
    $region74: #{tpu_custom_call.1} parent=1 // pred_check
      _
    $region75: #{tpu_custom_call.1} parent=1 // pred_check_branch
      %1804 = sbr.rel (0) target = $region77
    $region76: #{tpu_custom_call.1} parent=1 // pred_region
      %s1806 = ssub.s32 192, 192
      %1807 = vsyncadd [#allocation4], %s1806
      %s1809 = sshll.u32 [#allocation17], 4
      %s1810 = int_to_ptr.vmem [resolvable:$true] %s1809
      %1812 = dma.vmem_to_hbm [thread:$0]  %s1810, 192, %s9, [#allocation4]
    $region77: #{tpu_custom_call.1} parent=1 // pred_fallthru
      _
    // Predicated region
    $region78: #{tpu_custom_call.1} parent=1 // pred_check
      _
    $region79: #{tpu_custom_call.1} parent=1 // pred_check_branch
      %1814 = sbr.rel (0) target = $region81
    $region80: #{tpu_custom_call.1} parent=1 // pred_region
      %1815 = dma.done [#allocation4], 192
    $region81: #{tpu_custom_call.1} parent=1 // pred_fallthru
      _
    %1816 = vsyncpa [#allocation3], 1
    %1817 = vsyncpa [#allocation6], 1
    %1818 = vsyncpa [#allocation9], 1
    %1819 = vsyncpa [#allocation12], 1
    %1820 = vsyncpa [#allocation15], 1
    %1821 = vsyncpa [#allocation4], 1

</llo_original>
